<compile_context>
chip_gen: v7x
topology: tpu7x:2x2x1
jax: 0.10.0
libtpu: 0.0.40
codegen_flags: <defaults>
</compile_context>

<pallas_src>
import functools

import jax
import jax.numpy as jnp
from jax.experimental import pallas as pl
from jax.experimental.pallas import tpu as pltpu


def _adjust_smooth_l1_kernel(x_ref, t_ref, rm_ref, rv_ref,
                             loss_ref, new_rm_ref, new_rv_ref,
                             sum_acc, sumsq_acc, loss_acc, beta_sc, inv_beta_sc,
                             *, momentum, beta_max, n_rows, feat, groups):
    phase = pl.program_id(0)       # 0: column-stats pass, 1: loss pass
    i = pl.program_id(1)           # row-tile index
    n_tiles = pl.num_programs(1)

    # |x - t| for this tile; cast inside the kernel (no wrapper upcast).
    n = jnp.abs(x_ref[...].astype(jnp.float32) - t_ref[...].astype(jnp.float32))

    @pl.when(phase == 0)
    def _stats_pass():
        @pl.when(i == 0)
        def _():
            sum_acc[...] = jnp.zeros_like(sum_acc)
            sumsq_acc[...] = jnp.zeros_like(sumsq_acc)

        # One-pass stats: per-lane sum and sum-of-squares (sublane reduction).
        sum_acc[...] += jnp.sum(n, axis=0, keepdims=True)
        sumsq_acc[...] += jnp.sum(n * n, axis=0, keepdims=True)

        @pl.when(i == n_tiles - 1)
        def _finalize_stats():
            s = sum_acc[...]
            ss = sumsq_acc[...]
            # Fold the `groups` lane-groups of `feat` lanes so every lane
            # holds the full per-feature column total (log2(groups) rolls,
            # XLU slot -> essentially free next to the DMA-bound main loop).
            shift = feat
            while shift < feat * groups:
                s = s + pltpu.roll(s, shift, 1)
                ss = ss + pltpu.roll(ss, shift, 1)
                shift *= 2

            mean = s * (1.0 / n_rows)
            # Unbiased variance via sumsq. n_rows == 1 -> NaN which (as in
            # torch) trips the NaN gate and freezes the running stats.
            inv_nm1 = (1.0 / (n_rows - 1)) if n_rows > 1 else float("nan")
            var = (ss - n_rows * mean * mean) * inv_nm1

            # Keep the NaN gate vector-shaped ((1,1) broadcast) -- avoids a
            # rank-0 cross-lane reduce.
            has_nan = jnp.any(jnp.isnan(var), axis=1, keepdims=True)
            rm = rm_ref[...]
            rv = rv_ref[...]
            new_rm = jnp.where(has_nan, rm,
                               (1.0 - momentum) * rm + momentum * mean)
            new_rv = jnp.where(has_nan, rv,
                               (1.0 - momentum) * rv + momentum * var)
            new_rm_ref[...] = new_rm
            new_rv_ref[...] = new_rv

            # Adaptive beta: clamp AFTER the EMA update (as in torch).
            b = jnp.clip(new_rm - new_rv, 0.001, beta_max)
            beta_sc[...] = b
            # Hoisted reciprocal: EUP approx + one Newton step for accuracy.
            inv = pl.reciprocal(b, approx=True)
            inv_beta_sc[...] = inv * (2.0 - b * inv)

    @pl.when(phase == 1)
    def _loss_pass():
        @pl.when(i == 0)
        def _():
            loss_acc[...] = jnp.zeros_like(loss_acc)

        b = beta_sc[...]
        inv_b = inv_beta_sc[...]
        loss = jnp.where(n < b, 0.5 * n * n * inv_b, n - 0.5 * b)
        loss_acc[...] += jnp.sum(loss, axis=0, keepdims=True)

        @pl.when(i == n_tiles - 1)
        def _():
            # Final lane (XLU) reduction to a single (1,1) value.
            loss_ref[...] = jnp.sum(loss_acc[...], axis=1, keepdims=True)


def _choose_tiling(rows, requested):
    """Return (tile, pad_rows). Prefers an exact multiple-of-8 divisor;
    otherwise zero-pads rows up to a multiple of the requested tile."""
    if rows <= requested:
        return rows, 0
    t = max(8, requested - (requested % 8))
    d = t
    while d >= 8:
        if rows % d == 0:
            return d, 0
        d -= 8
    pad = (-rows) % t
    return t, pad


def adjust_smooth_l1_loss(inputs, target, running_mean, running_var,
                          *, momentum=0.1, beta=1.0 / 9, size_average=False,
                          tile_rows=1024):
    """Returns (loss, new_running_mean, new_running_var).

    inputs/target: (N, num_features); running stats: (num_features,) float32.
    """
    N, F = inputs.shape

    # Lane-dense packing: view (N, F) as (N//G, G*F) with G*F == 128 when
    # possible, so elementwise work and VMEM tiles use all 128 lanes.
    if F < 128 and 128 % F == 0 and N % (128 // F) == 0:
        G = 128 // F
    else:
        G = 1  # fallback: lane-sparse but still correct
    Np, Fp = N // G, G * F

    x_p = inputs.reshape(Np, Fp)
    t_p = target.reshape(Np, Fp)
    rm_p = jnp.tile(running_mean.astype(jnp.float32), G).reshape(1, Fp)
    rv_p = jnp.tile(running_var.astype(jnp.float32), G).reshape(1, Fp)

    tile, pad = _choose_tiling(Np, tile_rows)
    if pad:
        # Zero rows are exact no-ops: they add 0 to sum/sumsq and their loss
        # contribution is 0 because beta >= 0.001 > 0.
        x_p = jnp.pad(x_p, ((0, pad), (0, 0)))
        t_p = jnp.pad(t_p, ((0, pad), (0, 0)))
    n_tiles = (Np + pad) // tile

    kernel = functools.partial(
        _adjust_smooth_l1_kernel,
        momentum=float(momentum), beta_max=float(beta),
        n_rows=int(N), feat=int(F), groups=int(G))

    # TODO(synk): on v7x, split the row-tile axis across the two TensorCores
    # (per-core partial stats + combine) to use both cores.
    loss, new_rm, new_rv = pl.pallas_call(
        kernel,
        grid=(2, n_tiles),   # (phase: stats/loss, row tiles)
        out_shape=(
            jax.ShapeDtypeStruct((1, 1), jnp.float32),     # scalar loss
            jax.ShapeDtypeStruct((1, Fp), jnp.float32),    # new running mean
            jax.ShapeDtypeStruct((1, Fp), jnp.float32),    # new running var
        ),
        in_specs=[
            pl.BlockSpec((tile, Fp), lambda p, i: (i, 0)),
            pl.BlockSpec((tile, Fp), lambda p, i: (i, 0)),
            pl.BlockSpec((1, Fp), lambda p, i: (0, 0)),
            pl.BlockSpec((1, Fp), lambda p, i: (0, 0)),
        ],
        out_specs=(
            pl.BlockSpec((1, 1), lambda p, i: (0, 0)),
            pl.BlockSpec((1, Fp), lambda p, i: (0, 0)),
            pl.BlockSpec((1, Fp), lambda p, i: (0, 0)),
        ),
        scratch_shapes=[
            pltpu.VMEM((1, Fp), jnp.float32),   # per-lane sum
            pltpu.VMEM((1, Fp), jnp.float32),   # per-lane sum of squares
            pltpu.VMEM((1, Fp), jnp.float32),   # per-lane loss partials
            pltpu.VMEM((1, Fp), jnp.float32),   # beta (held between phases)
            pltpu.VMEM((1, Fp), jnp.float32),   # 1 / beta
        ],
        compiler_params=pltpu.CompilerParams(
            dimension_semantics=("arbitrary", "arbitrary")),
    )(x_p, t_p, rm_p, rv_p)

    loss = loss[0, 0]
    if size_average:
        loss = loss / (N * F)
    # Stats are replicated across the G lane groups; take the first F lanes.
    return loss, new_rm[0, :F], new_rv[0, :F]


def _reference(inputs, target, running_mean, running_var,
               momentum=0.1, beta=1.0 / 9, size_average=False):
    n = jnp.abs(inputs - target)
    N = n.shape[0]
    mean = jnp.mean(n, axis=0)
    var = jnp.sum((n - mean) ** 2, axis=0) / (N - 1)
    has_nan = jnp.any(jnp.isnan(var))
    new_rm = jnp.where(has_nan, running_mean,
                       (1 - momentum) * running_mean + momentum * mean)
    new_rv = jnp.where(has_nan, running_var,
                       (1 - momentum) * running_var + momentum * var)
    b = jnp.clip(new_rm - new_rv, 0.001, beta)[None, :]
    loss = jnp.where(n < b, 0.5 * n * n / b, n - 0.5 * b)
    out = jnp.mean(loss) if size_average else jnp.sum(loss)
    return out, new_rm, new_rv


if __name__ == "__main__":
    key = jax.random.PRNGKey(0)
    k1, k2 = jax.random.split(key)

    # Main config: N=1024 samples, 8 features -> packed lane-dense to
    # (64, 128); tile_rows=16 gives 4 row tiles per phase so the pipelined
    # grid path is actually exercised.
    N, F = 1024, 8
    beta_const = 1.0 / 9
    inputs = jax.random.normal(k1, (N, F), dtype=jnp.float32)
    target = jax.random.normal(k2, (N, F), dtype=jnp.float32)
    running_mean = jnp.full((F,), beta_const, dtype=jnp.float32)
    running_var = jnp.zeros((F,), dtype=jnp.float32)

    loss, new_rm, new_rv = adjust_smooth_l1_loss(
        inputs, target, running_mean, running_var,
        momentum=0.1, beta=beta_const, size_average=False, tile_rows=16)
    jax.block_until_ready((loss, new_rm, new_rv))

    ref_loss, ref_rm, ref_rv = _reference(
        inputs, target, running_mean, running_var,
        momentum=0.1, beta=beta_const, size_average=False)

    assert jnp.allclose(loss, ref_loss, rtol=2e-4), (loss, ref_loss)
    assert jnp.allclose(new_rm, ref_rm, rtol=1e-4, atol=1e-5)
    assert jnp.allclose(new_rv, ref_rv, rtol=1e-4, atol=1e-5)

    # Fallback path: F that does not divide 128 (G=1) and N that has no nice
    # tile divisor (exercises the zero-padded row tiling), plus size_average.
    N2, F2 = 100, 20
    k3, k4 = jax.random.split(k2)
    x2 = jax.random.normal(k3, (N2, F2), dtype=jnp.float32)
    t2 = jax.random.normal(k4, (N2, F2), dtype=jnp.float32)
    rm2 = jnp.full((F2,), beta_const, dtype=jnp.float32)
    rv2 = jnp.zeros((F2,), dtype=jnp.float32)
    loss2, nrm2, nrv2 = adjust_smooth_l1_loss(
        x2, t2, rm2, rv2, momentum=0.1, beta=beta_const,
        size_average=True, tile_rows=48)
    jax.block_until_ready((loss2, nrm2, nrv2))
    rl2, rrm2, rrv2 = _reference(x2, t2, rm2, rv2, momentum=0.1,
                                 beta=beta_const, size_average=True)
    assert jnp.allclose(loss2, rl2, rtol=2e-4), (loss2, rl2)
    assert jnp.allclose(nrm2, rrm2, rtol=1e-4, atol=1e-5)
    assert jnp.allclose(nrv2, rrv2, rtol=1e-4, atol=1e-5)

    print("KERNEL_OK")
</pallas_src>

<mosaic_0001>
module attributes {stable_mosaic.version = 11 : i64} {
  func.func @_adjust_smooth_l1_kernel(%arg0: i32, %arg1: i32, %arg2: memref<16x128xf32, #tpu.memory_space<vmem>>, %arg3: memref<16x128xf32, #tpu.memory_space<vmem>>, %arg4: memref<1x128xf32, #tpu.memory_space<vmem>>, %arg5: memref<1x128xf32, #tpu.memory_space<vmem>>, %arg6: memref<1x1xf32, #tpu.memory_space<vmem>>, %arg7: memref<1x128xf32, #tpu.memory_space<vmem>>, %arg8: memref<1x128xf32, #tpu.memory_space<vmem>>, %arg9: memref<1x128xf32, #tpu.memory_space<vmem>>, %arg10: memref<1x128xf32, #tpu.memory_space<vmem>>, %arg11: memref<1x128xf32, #tpu.memory_space<vmem>>, %arg12: memref<1x128xf32, #tpu.memory_space<vmem>>, %arg13: memref<1x128xf32, #tpu.memory_space<vmem>>) attributes {dimension_semantics = [#tpu.dimension_semantics<arbitrary>, #tpu.dimension_semantics<arbitrary>], iteration_bounds = array<i64: 2, 4>, scalar_prefetch = 0 : i64, scratch_operands = 5 : i64, tpu.core_type = #tpu.core_type<tc>, window_params = [{transform_indices = @transform_0, window_bounds = array<i64: 16, 128>}, {transform_indices = @transform_1, window_bounds = array<i64: 16, 128>}, {pipeline_mode = #tpu.pipeline_mode<synchronous>, transform_indices = @transform_2, window_bounds = array<i64: 1, 128>}, {pipeline_mode = #tpu.pipeline_mode<synchronous>, transform_indices = @transform_3, window_bounds = array<i64: 1, 128>}, {pipeline_mode = #tpu.pipeline_mode<synchronous>, transform_indices = @transform_4, window_bounds = array<i64: 1, 1>}, {pipeline_mode = #tpu.pipeline_mode<synchronous>, transform_indices = @transform_5, window_bounds = array<i64: 1, 128>}, {pipeline_mode = #tpu.pipeline_mode<synchronous>, transform_indices = @transform_6, window_bounds = array<i64: 1, 128>}]} {
    %c0 = arith.constant 0 : index
    %c0_0 = arith.constant 0 : index
    %0 = vector.load %arg2[%c0, %c0_0] : memref<16x128xf32, #tpu.memory_space<vmem>>, vector<16x128xf32>
    %c0_1 = arith.constant 0 : index
    %c0_2 = arith.constant 0 : index
    %1 = vector.load %arg3[%c0_1, %c0_2] : memref<16x128xf32, #tpu.memory_space<vmem>>, vector<16x128xf32>
    %2 = arith.subf %0, %1 : vector<16x128xf32>
    %3 = math.absf %2 : vector<16x128xf32>
    %c0_i32 = arith.constant 0 : i32
    %4 = arith.cmpi eq, %arg0, %c0_i32 : i32
    %5 = arith.extui %4 : i1 to i32
    %c0_i32_3 = arith.constant 0 : i32
    %6 = arith.cmpi ne, %5, %c0_i32_3 : i32
    scf.if %6 {
      %c0_i32_5 = arith.constant 0 : i32
      %10 = arith.cmpi eq, %arg1, %c0_i32_5 : i32
      %11 = arith.extui %10 : i1 to i32
      %c0_i32_6 = arith.constant 0 : i32
      %12 = arith.cmpi ne, %11, %c0_i32_6 : i32
      scf.if %12 {
        %cst_17 = arith.constant 0.000000e+00 : f32
        %27 = vector.broadcast %cst_17 : f32 to vector<1x128xf32>
        %c0_18 = arith.constant 0 : index
        %c0_19 = arith.constant 0 : index
        %28 = vector.load %arg9[%c0_18, %c0_19] : memref<1x128xf32, #tpu.memory_space<vmem>>, vector<1x128xf32>
        tpu.vector_store %arg9[%c0_18, %c0_19], %27 {strides = array<i32>} : memref<1x128xf32, #tpu.memory_space<vmem>>, vector<1x128xf32>,
        %cst_20 = arith.constant 0.000000e+00 : f32
        %29 = vector.broadcast %cst_20 : f32 to vector<1x128xf32>
        %c0_21 = arith.constant 0 : index
        %c0_22 = arith.constant 0 : index
        %30 = vector.load %arg10[%c0_21, %c0_22] : memref<1x128xf32, #tpu.memory_space<vmem>>, vector<1x128xf32>
        tpu.vector_store %arg10[%c0_21, %c0_22], %29 {strides = array<i32>} : memref<1x128xf32, #tpu.memory_space<vmem>>, vector<1x128xf32>,
      } else {
      }
      %c0_7 = arith.constant 0 : index
      %c0_8 = arith.constant 0 : index
      %13 = vector.load %arg9[%c0_7, %c0_8] : memref<1x128xf32, #tpu.memory_space<vmem>>, vector<1x128xf32>
      %cst = arith.constant dense<0.000000e+00> : vector<128xf32>
      %14 = vector.multi_reduction <add>, %3, %cst [0] : vector<16x128xf32> to vector<128xf32>
      %15 = vector.shape_cast %14 : vector<128xf32> to vector<1x128xf32>
      %16 = arith.addf %13, %15 : vector<1x128xf32>
      %c0_9 = arith.constant 0 : index
      %c0_10 = arith.constant 0 : index
      %17 = vector.load %arg9[%c0_9, %c0_10] : memref<1x128xf32, #tpu.memory_space<vmem>>, vector<1x128xf32>
      tpu.vector_store %arg9[%c0_9, %c0_10], %16 {strides = array<i32>} : memref<1x128xf32, #tpu.memory_space<vmem>>, vector<1x128xf32>,
      %c0_11 = arith.constant 0 : index
      %c0_12 = arith.constant 0 : index
      %18 = vector.load %arg10[%c0_11, %c0_12] : memref<1x128xf32, #tpu.memory_space<vmem>>, vector<1x128xf32>
      %19 = arith.mulf %3, %3 : vector<16x128xf32>
      %cst_13 = arith.constant dense<0.000000e+00> : vector<128xf32>
      %20 = vector.multi_reduction <add>, %19, %cst_13 [0] : vector<16x128xf32> to vector<128xf32>
      %21 = vector.shape_cast %20 : vector<128xf32> to vector<1x128xf32>
      %22 = arith.addf %18, %21 : vector<1x128xf32>
      %c0_14 = arith.constant 0 : index
      %c0_15 = arith.constant 0 : index
      %23 = vector.load %arg10[%c0_14, %c0_15] : memref<1x128xf32, #tpu.memory_space<vmem>>, vector<1x128xf32>
      tpu.vector_store %arg10[%c0_14, %c0_15], %22 {strides = array<i32>} : memref<1x128xf32, #tpu.memory_space<vmem>>, vector<1x128xf32>,
      %c3_i32 = arith.constant 3 : i32
      %24 = arith.cmpi eq, %arg1, %c3_i32 : i32
      %25 = arith.extui %24 : i1 to i32
      %c0_i32_16 = arith.constant 0 : i32
      %26 = arith.cmpi ne, %25, %c0_i32_16 : i32
      scf.if %26 {
        %c0_17 = arith.constant 0 : index
        %c0_18 = arith.constant 0 : index
        %27 = vector.load %arg9[%c0_17, %c0_18] : memref<1x128xf32, #tpu.memory_space<vmem>>, vector<1x128xf32>
        %c0_19 = arith.constant 0 : index
        %c0_20 = arith.constant 0 : index
        %28 = vector.load %arg10[%c0_19, %c0_20] : memref<1x128xf32, #tpu.memory_space<vmem>>, vector<1x128xf32>
        %c8_i32 = arith.constant 8 : i32
        %29 = tpu.dynamic_rotate %27 by %c8_i32 dim 1 : vector<1x128xf32>, i32 -> vector<1x128xf32>
        %30 = arith.addf %27, %29 : vector<1x128xf32>
        %c8_i32_21 = arith.constant 8 : i32
        %31 = tpu.dynamic_rotate %28 by %c8_i32_21 dim 1 : vector<1x128xf32>, i32 -> vector<1x128xf32>
        %32 = arith.addf %28, %31 : vector<1x128xf32>
        %c16_i32 = arith.constant 16 : i32
        %33 = tpu.dynamic_rotate %30 by %c16_i32 dim 1 : vector<1x128xf32>, i32 -> vector<1x128xf32>
        %34 = arith.addf %30, %33 : vector<1x128xf32>
        %c16_i32_22 = arith.constant 16 : i32
        %35 = tpu.dynamic_rotate %32 by %c16_i32_22 dim 1 : vector<1x128xf32>, i32 -> vector<1x128xf32>
        %36 = arith.addf %32, %35 : vector<1x128xf32>
        %c32_i32 = arith.constant 32 : i32
        %37 = tpu.dynamic_rotate %34 by %c32_i32 dim 1 : vector<1x128xf32>, i32 -> vector<1x128xf32>
        %38 = arith.addf %34, %37 : vector<1x128xf32>
        %c32_i32_23 = arith.constant 32 : i32
        %39 = tpu.dynamic_rotate %36 by %c32_i32_23 dim 1 : vector<1x128xf32>, i32 -> vector<1x128xf32>
        %40 = arith.addf %36, %39 : vector<1x128xf32>
        %c64_i32 = arith.constant 64 : i32
        %41 = tpu.dynamic_rotate %38 by %c64_i32 dim 1 : vector<1x128xf32>, i32 -> vector<1x128xf32>
        %42 = arith.addf %38, %41 : vector<1x128xf32>
        %c64_i32_24 = arith.constant 64 : i32
        %43 = tpu.dynamic_rotate %40 by %c64_i32_24 dim 1 : vector<1x128xf32>, i32 -> vector<1x128xf32>
        %44 = arith.addf %40, %43 : vector<1x128xf32>
        %cst_25 = arith.constant 9.765625E-4 : f32
        %45 = vector.broadcast %cst_25 : f32 to vector<1x128xf32>
        %46 = arith.mulf %42, %45 : vector<1x128xf32>
        %cst_26 = arith.constant 1.024000e+03 : f32
        %47 = vector.broadcast %cst_26 : f32 to vector<1x128xf32>
        %48 = arith.mulf %47, %46 : vector<1x128xf32>
        %49 = arith.mulf %48, %46 : vector<1x128xf32>
        %50 = arith.subf %44, %49 : vector<1x128xf32>
        %cst_27 = arith.constant 9.77517105E-4 : f32
        %51 = vector.broadcast %cst_27 : f32 to vector<1x128xf32>
        %52 = arith.mulf %50, %51 : vector<1x128xf32>
        %53 = arith.cmpf one, %52, %52 : vector<1x128xf32>
        %cst_28 = arith.constant 1.000000e+00 : f32
        %cst_29 = arith.constant 0.000000e+00 : f32
        %54 = vector.broadcast %cst_28 : f32 to vector<1x128xf32>
        %55 = vector.broadcast %cst_29 : f32 to vector<1x128xf32>
        %56 = arith.select %53, %54, %55 : vector<1x128xi1>, vector<1x128xf32>
        %cst_30 = arith.constant dense<0xFF800000> : vector<1xf32>
        %57 = vector.multi_reduction <maximumf>, %56, %cst_30 [1] : vector<1x128xf32> to vector<1xf32>
        %cst_31 = arith.constant 0.000000e+00 : f32
        %58 = vector.broadcast %cst_31 : f32 to vector<1xf32>
        %59 = arith.cmpf ogt, %57, %58 : vector<1xf32>
        %60 = vector.shape_cast %59 : vector<1xi1> to vector<1x1xi1>
        %c0_32 = arith.constant 0 : index
        %c0_33 = arith.constant 0 : index
        %61 = vector.load %arg4[%c0_32, %c0_33] : memref<1x128xf32, #tpu.memory_space<vmem>>, vector<1x128xf32>
        %c0_34 = arith.constant 0 : index
        %c0_35 = arith.constant 0 : index
        %62 = vector.load %arg5[%c0_34, %c0_35] : memref<1x128xf32, #tpu.memory_space<vmem>>, vector<1x128xf32>
        %cst_36 = arith.constant 0.899999976 : f32
        %63 = vector.broadcast %cst_36 : f32 to vector<1x128xf32>
        %64 = arith.mulf %63, %61 : vector<1x128xf32>
        %cst_37 = arith.constant 1.000000e-01 : f32
        %65 = vector.broadcast %cst_37 : f32 to vector<1x128xf32>
        %66 = arith.mulf %65, %46 : vector<1x128xf32>
        %67 = arith.addf %64, %66 : vector<1x128xf32>
        %68 = vector.shape_cast %60 : vector<1x1xi1> to vector<1x1xi1>
        %69 = vector.broadcast %68 : vector<1x1xi1> to vector<1x128xi1>
        %70 = arith.select %69, %61, %67 : vector<1x128xi1>, vector<1x128xf32>
        %cst_38 = arith.constant 0.899999976 : f32
        %71 = vector.broadcast %cst_38 : f32 to vector<1x128xf32>
        %72 = arith.mulf %71, %62 : vector<1x128xf32>
        %cst_39 = arith.constant 1.000000e-01 : f32
        %73 = vector.broadcast %cst_39 : f32 to vector<1x128xf32>
        %74 = arith.mulf %73, %52 : vector<1x128xf32>
        %75 = arith.addf %72, %74 : vector<1x128xf32>
        %76 = vector.shape_cast %60 : vector<1x1xi1> to vector<1x1xi1>
        %77 = vector.broadcast %76 : vector<1x1xi1> to vector<1x128xi1>
        %78 = arith.select %77, %62, %75 : vector<1x128xi1>, vector<1x128xf32>
        %c0_40 = arith.constant 0 : index
        %c0_41 = arith.constant 0 : index
        %79 = vector.load %arg7[%c0_40, %c0_41] : memref<1x128xf32, #tpu.memory_space<vmem>>, vector<1x128xf32>
        tpu.vector_store %arg7[%c0_40, %c0_41], %70 {strides = array<i32>} : memref<1x128xf32, #tpu.memory_space<vmem>>, vector<1x128xf32>,
        %c0_42 = arith.constant 0 : index
        %c0_43 = arith.constant 0 : index
        %80 = vector.load %arg8[%c0_42, %c0_43] : memref<1x128xf32, #tpu.memory_space<vmem>>, vector<1x128xf32>
        tpu.vector_store %arg8[%c0_42, %c0_43], %78 {strides = array<i32>} : memref<1x128xf32, #tpu.memory_space<vmem>>, vector<1x128xf32>,
        %81 = arith.subf %70, %78 : vector<1x128xf32>
        %cst_44 = arith.constant 1.000000e-03 : f32
        %cst_45 = arith.constant 0.111111112 : f32
        %82 = vector.broadcast %cst_44 : f32 to vector<1x128xf32>
        %83 = arith.maximumf %82, %81 : vector<1x128xf32>
        %84 = vector.broadcast %cst_45 : f32 to vector<1x128xf32>
        %85 = arith.minimumf %84, %83 : vector<1x128xf32>
        %c0_46 = arith.constant 0 : index
        %c0_47 = arith.constant 0 : index
        %86 = vector.load %arg12[%c0_46, %c0_47] : memref<1x128xf32, #tpu.memory_space<vmem>>, vector<1x128xf32>
        tpu.vector_store %arg12[%c0_46, %c0_47], %85 {strides = array<i32>} : memref<1x128xf32, #tpu.memory_space<vmem>>, vector<1x128xf32>,
        %87 = tpu.reciprocal %85 {approx = true} : vector<1x128xf32> -> vector<1x128xf32>
        %88 = arith.mulf %85, %87 : vector<1x128xf32>
        %cst_48 = arith.constant 2.000000e+00 : f32
        %89 = vector.broadcast %cst_48 : f32 to vector<1x128xf32>
        %90 = arith.subf %89, %88 : vector<1x128xf32>
        %91 = arith.mulf %87, %90 : vector<1x128xf32>
        %c0_49 = arith.constant 0 : index
        %c0_50 = arith.constant 0 : index
        %92 = vector.load %arg13[%c0_49, %c0_50] : memref<1x128xf32, #tpu.memory_space<vmem>>, vector<1x128xf32>
        tpu.vector_store %arg13[%c0_49, %c0_50], %91 {strides = array<i32>} : memref<1x128xf32, #tpu.memory_space<vmem>>, vector<1x128xf32>,
      } else {
      }
    } else {
    }
    %c1_i32 = arith.constant 1 : i32
    %7 = arith.cmpi eq, %arg0, %c1_i32 : i32
    %8 = arith.extui %7 : i1 to i32
    %c0_i32_4 = arith.constant 0 : i32
    %9 = arith.cmpi ne, %8, %c0_i32_4 : i32
    scf.if %9 {
      %c0_i32_5 = arith.constant 0 : i32
      %10 = arith.cmpi eq, %arg1, %c0_i32_5 : i32
      %11 = arith.extui %10 : i1 to i32
      %c0_i32_6 = arith.constant 0 : i32
      %12 = arith.cmpi ne, %11, %c0_i32_6 : i32
      scf.if %12 {
        %cst_18 = arith.constant 0.000000e+00 : f32
        %35 = vector.broadcast %cst_18 : f32 to vector<1x128xf32>
        %c0_19 = arith.constant 0 : index
        %c0_20 = arith.constant 0 : index
        %36 = vector.load %arg11[%c0_19, %c0_20] : memref<1x128xf32, #tpu.memory_space<vmem>>, vector<1x128xf32>
        tpu.vector_store %arg11[%c0_19, %c0_20], %35 {strides = array<i32>} : memref<1x128xf32, #tpu.memory_space<vmem>>, vector<1x128xf32>,
      } else {
      }
      %c0_7 = arith.constant 0 : index
      %c0_8 = arith.constant 0 : index
      %13 = vector.load %arg12[%c0_7, %c0_8] : memref<1x128xf32, #tpu.memory_space<vmem>>, vector<1x128xf32>
      %c0_9 = arith.constant 0 : index
      %c0_10 = arith.constant 0 : index
      %14 = vector.load %arg13[%c0_9, %c0_10] : memref<1x128xf32, #tpu.memory_space<vmem>>, vector<1x128xf32>
      %15 = vector.broadcast %13 : vector<1x128xf32> to vector<16x128xf32>
      %16 = arith.cmpf olt, %3, %15 : vector<16x128xf32>
      %cst = arith.constant 5.000000e-01 : f32
      %17 = vector.broadcast %cst : f32 to vector<16x128xf32>
      %18 = arith.mulf %17, %3 : vector<16x128xf32>
      %19 = arith.mulf %18, %3 : vector<16x128xf32>
      %20 = vector.broadcast %14 : vector<1x128xf32> to vector<16x128xf32>
      %21 = arith.mulf %19, %20 : vector<16x128xf32>
      %cst_11 = arith.constant 5.000000e-01 : f32
      %22 = vector.broadcast %cst_11 : f32 to vector<1x128xf32>
      %23 = arith.mulf %22, %13 : vector<1x128xf32>
      %24 = vector.broadcast %23 : vector<1x128xf32> to vector<16x128xf32>
      %25 = arith.subf %3, %24 : vector<16x128xf32>
      %26 = arith.select %16, %21, %25 : vector<16x128xi1>, vector<16x128xf32>
      %c0_12 = arith.constant 0 : index
      %c0_13 = arith.constant 0 : index
      %27 = vector.load %arg11[%c0_12, %c0_13] : memref<1x128xf32, #tpu.memory_space<vmem>>, vector<1x128xf32>
      %cst_14 = arith.constant dense<0.000000e+00> : vector<128xf32>
      %28 = vector.multi_reduction <add>, %26, %cst_14 [0] : vector<16x128xf32> to vector<128xf32>
      %29 = vector.shape_cast %28 : vector<128xf32> to vector<1x128xf32>
      %30 = arith.addf %27, %29 : vector<1x128xf32>
      %c0_15 = arith.constant 0 : index
      %c0_16 = arith.constant 0 : index
      %31 = vector.load %arg11[%c0_15, %c0_16] : memref<1x128xf32, #tpu.memory_space<vmem>>, vector<1x128xf32>
      tpu.vector_store %arg11[%c0_15, %c0_16], %30 {strides = array<i32>} : memref<1x128xf32, #tpu.memory_space<vmem>>, vector<1x128xf32>,
      %c3_i32 = arith.constant 3 : i32
      %32 = arith.cmpi eq, %arg1, %c3_i32 : i32
      %33 = arith.extui %32 : i1 to i32
      %c0_i32_17 = arith.constant 0 : i32
      %34 = arith.cmpi ne, %33, %c0_i32_17 : i32
      scf.if %34 {
        %c0_18 = arith.constant 0 : index
        %c0_19 = arith.constant 0 : index
        %35 = vector.load %arg11[%c0_18, %c0_19] : memref<1x128xf32, #tpu.memory_space<vmem>>, vector<1x128xf32>
        %cst_20 = arith.constant dense<0.000000e+00> : vector<1xf32>
        %36 = vector.multi_reduction <add>, %35, %cst_20 [1] : vector<1x128xf32> to vector<1xf32>
        %37 = vector.shape_cast %36 : vector<1xf32> to vector<1x1xf32>
        %c0_21 = arith.constant 0 : index
        %c0_22 = arith.constant 0 : index
        %38 = vector.load %arg6[%c0_21, %c0_22] : memref<1x1xf32, #tpu.memory_space<vmem>>, vector<1x1xf32>
        tpu.vector_store %arg6[%c0_21, %c0_22], %37 {strides = array<i32>} : memref<1x1xf32, #tpu.memory_space<vmem>>, vector<1x1xf32>,
      } else {
      }
    } else {
    }
    return
  }
  func.func @transform_0(%arg0: i32, %arg1: i32) -> (i32, i32) {
    %c0_i32 = arith.constant 0 : i32
    %c0_i32_0 = arith.constant 0 : i32
    return %arg1, %c0_i32 : i32, i32
  }
  func.func @transform_1(%arg0: i32, %arg1: i32) -> (i32, i32) {
    %c0_i32 = arith.constant 0 : i32
    %c0_i32_0 = arith.constant 0 : i32
    return %arg1, %c0_i32 : i32, i32
  }
  func.func @transform_2(%arg0: i32, %arg1: i32) -> (i32, i32) {
    %c0_i32 = arith.constant 0 : i32
    %c0_i32_0 = arith.constant 0 : i32
    %c0_i32_1 = arith.constant 0 : i32
    return %c0_i32, %c0_i32_0 : i32, i32
  }
  func.func @transform_3(%arg0: i32, %arg1: i32) -> (i32, i32) {
    %c0_i32 = arith.constant 0 : i32
    %c0_i32_0 = arith.constant 0 : i32
    %c0_i32_1 = arith.constant 0 : i32
    return %c0_i32, %c0_i32_0 : i32, i32
  }
  func.func @transform_4(%arg0: i32, %arg1: i32) -> (i32, i32) {
    %c0_i32 = arith.constant 0 : i32
    %c0_i32_0 = arith.constant 0 : i32
    %c0_i32_1 = arith.constant 0 : i32
    return %c0_i32, %c0_i32_0 : i32, i32
  }
  func.func @transform_5(%arg0: i32, %arg1: i32) -> (i32, i32) {
    %c0_i32 = arith.constant 0 : i32
    %c0_i32_0 = arith.constant 0 : i32
    %c0_i32_1 = arith.constant 0 : i32
    return %c0_i32, %c0_i32_0 : i32, i32
  }
  func.func @transform_6(%arg0: i32, %arg1: i32) -> (i32, i32) {
    %c0_i32 = arith.constant 0 : i32
    %c0_i32_0 = arith.constant 0 : i32
    %c0_i32_1 = arith.constant 0 : i32
    return %c0_i32, %c0_i32_0 : i32, i32
  }
}

</mosaic_0001>

<llo_original>
// kernel: tpu_custom_call.1
$region0: #{tpu_custom_call.1}
  #allocation0 [shape = 'u32[]', space=smem, size = 0x4, offset = 0x4, fixed_abs, tag = 'smem constant byte address 0x4 - core index']
  #allocation1 [shape = 'u32[144,128]{1,0:T(1,128)}', space=vmem, size = 0x12000, scoped, tag = 'internal scratch']
  #allocation2 [shape = 'f32[1,128]{1,0:T(1,128)}', space=vmem, size = 0x200, scoped, tag = 'scratch operand']
  #allocation3 [shape = 'f32[1,128]{1,0:T(1,128)}', space=vmem, size = 0x200, scoped, tag = 'scratch operand']
  #allocation4 [shape = 'f32[1,128]{1,0:T(1,128)}', space=vmem, size = 0x200, scoped, tag = 'scratch operand']
  #allocation5 [shape = 'f32[1,128]{1,0:T(1,128)}', space=vmem, size = 0x200, scoped, tag = 'scratch operand']
  #allocation6 [shape = 'f32[1,128]{1,0:T(1,128)}', space=vmem, size = 0x200, scoped, tag = 'scratch operand']
  %s0 = inlined_call_operand.hbm [shape: f32[64,128], index: 0, kind: input, shape index: {}]
  %s1 = inlined_call_operand.hbm [shape: f32[64,128], index: 1, kind: input, shape index: {}]
  %s2 = inlined_call_operand.vmem [shape: f32[1,128], index: 2, kind: input, shape index: {}]
  %s3 = inlined_call_operand.vmem [shape: f32[1,128], index: 3, kind: input, shape index: {}]
  %s4 = inlined_call_operand.hbm [shape: f32[1,1], index: 4, kind: output, shape index: {0}]
  %s5 = inlined_call_operand.hbm [shape: f32[1,128], index: 5, kind: output, shape index: {1}]
  %s6 = inlined_call_operand.hbm [shape: f32[1,128], index: 6, kind: output, shape index: {2}]
  %7 = xla_tuple %s4, %s5, %s6
  %s8 = sld [smem:[#allocation0]]
  $region97: #{tpu_custom_call.1} parent=0
    _
  %s10 = ssub.s32 1, %s8
  %s11 = scalar_select 0, %s10, %s8
  $region1: #{tpu_custom_call.1} parent=0
    #allocation7 [shape = 'u8[16384]{0}', space=vmem, size = 0x4000, scoped, tag = 'input window, operand 0']
    #allocation8 [shape = 's32[2]{0}', space=sflag, size = 0x8, scoped, tag = 'scoped memory for tpu_custom_call.1']
    #allocation9 [shape = 's32[2]{0}', space=sflag, size = 0x8, scoped, tag = 'scoped memory for tpu_custom_call.1']
    #allocation10 [shape = 'u8[16384]{0}', space=vmem, size = 0x4000, scoped, tag = 'input window, operand 1']
    #allocation11 [shape = 's32[2]{0}', space=sflag, size = 0x8, scoped, tag = 'scoped memory for tpu_custom_call.1']
    #allocation12 [shape = 'u8[512]{0}', space=vmem, size = 0x400, scoped, tag = 'output window, operand 0, single buffered']
    #allocation13 [shape = 'u8[512]{0}', space=vmem, size = 0x400, scoped, tag = 'output window, operand 1, single buffered']
    #allocation14 [shape = 's32[1]{0}', space=sflag, size = 0x4, scoped, tag = 'scoped memory for tpu_custom_call.1']
    #allocation15 [shape = 'u8[512]{0}', space=vmem, size = 0x400, scoped, tag = 'output window, operand 2, single buffered']
    %12 = vsyncpa [#allocation8], 0
    %s13 = scalar_lea.sflag [#allocation8], 1
    %14 = vsyncpa %s13, 0
    %15 = vsyncpa [#allocation11], 0
    %s16 = scalar_lea.sflag [#allocation11], 1
    %17 = vsyncpa %s16, 0
    %18 = vsyncpa [#allocation9], 0
    %19 = vsyncpa [#allocation14], 0
    loop: start=0, step=1, limit=10
    $region2: #{tpu_custom_call.1} parent=1 // loop_pre_header
      _
    $region3: #{tpu_custom_call.1} parent=1 // loop_header
      %s21 = sphi 0, %s25
      %p22 = scmp.ge.s32.totalorder %s21, 10
      %s28 = sphi 0, %s40
      %s29 = sphi 0, %s36
      %s30 = sphi 0, %s28
      %s31 = sphi 0, %s29
      %s32 = sphi 0, %s30
      %s33 = sphi 0, %s31
      %s43 = sphi 0, %s45
      %s46 = sphi 0, %s43
      %s47 = sphi 0, %s46
      %s63 = sphi 0, %s47
      %s69 = sphi 0, %s71
      %s72 = sphi 0, %s69
      %s73 = sphi 0, %s72
      %s89 = sphi 0, %s73
      %s93 = sphi 0, %s93
      %s95 = sphi 0, %s93
      %s96 = sphi 0, %s95
      %s110 = sphi 0, %s96
      %s114 = sphi 0, %s114
      %s116 = sphi 0, %s114
      %s117 = sphi 0, %s116
      %s131 = sphi 0, %s117
      %s135 = sphi 0, %s135
      %s137 = sphi 0, %s135
      %s138 = sphi 0, %s137
      %s152 = sphi 0, %s138
      %s156 = sphi 0, %s156
      %s158 = sphi 0, %s156
      %s159 = sphi 0, %s158
      %s173 = sphi 0, %s159
      %s177 = sphi 0, %s177
      %s179 = sphi 0, %s177
      %s180 = sphi 0, %s179
      %s194 = sphi 0, %s180
    $region4: #{tpu_custom_call.1} parent=1 // loop_header_branch
      %24 = sbr.rel (%p22) target = $region8
    $region5: #{tpu_custom_call.1} parent=1 // loop_body
      %s26 = ssub.s32 %s21, 1
      %s27 = ssub.s32 %s21, 2
      %s34 = sadd.s32 1, %s29
      %p35 = scmp.ge.s32.totalorder %s34, 4
      %s36 = scalar_select %p35, 0, %s34
      %s37 = sadd.s32 1, %s28
      %s38 = scalar_select %p35, %s37, %s28
      %p39 = scmp.ge.s32.totalorder %s38, 2
      %s40 = scalar_select %p39, 0, %s38
      %s41 = ssub.s32 %s29, %s36
      %p42 = scmp.eq.s32.totalorder %s41, 0
      %s44 = sadd.s32 %s43, 1
      %s45 = scalar_select %p42, %s43, %s44
      %p48 = pneg %p42
      %p49 = scmp.eq.s32.totalorder %s21, 7
      %p50 = por %p48, %p49
      %p51 = scmp.ne.s32.totalorder %s43, %s46
      %p52 = scmp.eq.s32.totalorder %s21, 0
      %p53 = por %p51, %p52
      %p54 = scmp.ne.s32.totalorder %s43, %s46
      %p55 = scmp.eq.s32.totalorder %s26, 7
      %p56 = por %p54, %p55
      %p57 = scmp.ne.s32.totalorder %s46, %s47
      %p58 = scmp.eq.s32.totalorder %s26, 0
      %p59 = por %p57, %p58
      %p60 = scmp.ne.s32.totalorder %s46, %s47
      %p61 = scmp.eq.s32.totalorder %s27, 7
      %p62 = por %p60, %p61
      %p64 = scmp.ne.s32.totalorder %s47, %s63
      %p65 = scmp.eq.s32.totalorder %s27, 0
      %p66 = por %p64, %p65
      %s67 = ssub.s32 %s29, %s36
      %p68 = scmp.eq.s32.totalorder %s67, 0
      %s70 = sadd.s32 %s69, 1
      %s71 = scalar_select %p68, %s69, %s70
      %p74 = pneg %p68
      %p75 = scmp.eq.s32.totalorder %s21, 7
      %p76 = por %p74, %p75
      %p77 = scmp.ne.s32.totalorder %s69, %s72
      %p78 = scmp.eq.s32.totalorder %s21, 0
      %p79 = por %p77, %p78
      %p80 = scmp.ne.s32.totalorder %s69, %s72
      %p81 = scmp.eq.s32.totalorder %s26, 7
      %p82 = por %p80, %p81
      %p83 = scmp.ne.s32.totalorder %s72, %s73
      %p84 = scmp.eq.s32.totalorder %s26, 0
      %p85 = por %p83, %p84
      %p86 = scmp.ne.s32.totalorder %s72, %s73
      %p87 = scmp.eq.s32.totalorder %s27, 7
      %p88 = por %p86, %p87
      %p90 = scmp.ne.s32.totalorder %s73, %s89
      %p91 = scmp.eq.s32.totalorder %s27, 0
      %p92 = por %p90, %p91
      %s94 = sadd.s32 %s93, 1
      %p97 = scmp.eq.s32.totalorder %s21, 7
      %p98 = scmp.ne.s32.totalorder %s93, %s95
      %p99 = scmp.eq.s32.totalorder %s21, 0
      %p100 = por %p98, %p99
      %p101 = scmp.ne.s32.totalorder %s93, %s95
      %p102 = scmp.eq.s32.totalorder %s26, 7
      %p103 = por %p101, %p102
      %p104 = scmp.ne.s32.totalorder %s95, %s96
      %p105 = scmp.eq.s32.totalorder %s26, 0
      %p106 = por %p104, %p105
      %p107 = scmp.ne.s32.totalorder %s95, %s96
      %p108 = scmp.eq.s32.totalorder %s27, 7
      %p109 = por %p107, %p108
      %p111 = scmp.ne.s32.totalorder %s96, %s110
      %p112 = scmp.eq.s32.totalorder %s27, 0
      %p113 = por %p111, %p112
      %s115 = sadd.s32 %s114, 1
      %p118 = scmp.eq.s32.totalorder %s21, 7
      %p119 = scmp.ne.s32.totalorder %s114, %s116
      %p120 = scmp.eq.s32.totalorder %s21, 0
      %p121 = por %p119, %p120
      %p122 = scmp.ne.s32.totalorder %s114, %s116
      %p123 = scmp.eq.s32.totalorder %s26, 7
      %p124 = por %p122, %p123
      %p125 = scmp.ne.s32.totalorder %s116, %s117
      %p126 = scmp.eq.s32.totalorder %s26, 0
      %p127 = por %p125, %p126
      %p128 = scmp.ne.s32.totalorder %s116, %s117
      %p129 = scmp.eq.s32.totalorder %s27, 7
      %p130 = por %p128, %p129
      %p132 = scmp.ne.s32.totalorder %s117, %s131
      %p133 = scmp.eq.s32.totalorder %s27, 0
      %p134 = por %p132, %p133
      %s136 = sadd.s32 %s135, 1
      %p139 = scmp.eq.s32.totalorder %s21, 7
      %p140 = scmp.ne.s32.totalorder %s135, %s137
      %p141 = scmp.eq.s32.totalorder %s21, 0
      %p142 = por %p140, %p141
      %p143 = scmp.ne.s32.totalorder %s135, %s137
      %p144 = scmp.eq.s32.totalorder %s26, 7
      %p145 = por %p143, %p144
      %p146 = scmp.ne.s32.totalorder %s137, %s138
      %p147 = scmp.eq.s32.totalorder %s26, 0
      %p148 = por %p146, %p147
      %p149 = scmp.ne.s32.totalorder %s137, %s138
      %p150 = scmp.eq.s32.totalorder %s27, 7
      %p151 = por %p149, %p150
      %p153 = scmp.ne.s32.totalorder %s138, %s152
      %p154 = scmp.eq.s32.totalorder %s27, 0
      %p155 = por %p153, %p154
      %s157 = sadd.s32 %s156, 1
      %p160 = scmp.eq.s32.totalorder %s21, 7
      %p161 = scmp.ne.s32.totalorder %s156, %s158
      %p162 = scmp.eq.s32.totalorder %s21, 0
      %p163 = por %p161, %p162
      %p164 = scmp.ne.s32.totalorder %s156, %s158
      %p165 = scmp.eq.s32.totalorder %s26, 7
      %p166 = por %p164, %p165
      %p167 = scmp.ne.s32.totalorder %s158, %s159
      %p168 = scmp.eq.s32.totalorder %s26, 0
      %p169 = por %p167, %p168
      %p170 = scmp.ne.s32.totalorder %s158, %s159
      %p171 = scmp.eq.s32.totalorder %s27, 7
      %p172 = por %p170, %p171
      %p174 = scmp.ne.s32.totalorder %s159, %s173
      %p175 = scmp.eq.s32.totalorder %s27, 0
      %p176 = por %p174, %p175
      %s178 = sadd.s32 %s177, 1
      %p181 = scmp.eq.s32.totalorder %s21, 7
      %p182 = scmp.ne.s32.totalorder %s177, %s179
      %p183 = scmp.eq.s32.totalorder %s21, 0
      %p184 = por %p182, %p183
      %p185 = scmp.ne.s32.totalorder %s177, %s179
      %p186 = scmp.eq.s32.totalorder %s26, 7
      %p187 = por %p185, %p186
      %p188 = scmp.ne.s32.totalorder %s179, %s180
      %p189 = scmp.eq.s32.totalorder %s26, 0
      %p190 = por %p188, %p189
      %p191 = scmp.ne.s32.totalorder %s179, %s180
      %p192 = scmp.eq.s32.totalorder %s27, 7
      %p193 = por %p191, %p192
      %p195 = scmp.ne.s32.totalorder %s180, %s194
      %p196 = scmp.eq.s32.totalorder %s27, 0
      %p197 = por %p195, %p196
      %p198 = scmp.le.s32.totalorder 1, %s21
      %p199 = scmp.lt.s32.totalorder %s21, 9
      %p200 = pnand %p198, %p199
      %p201 = pneg %p200
      // Predicated region
      $region9: #{tpu_custom_call.1} parent=5 // pred_check
        _
      $region10: #{tpu_custom_call.1} parent=5 // pred_check_branch
        %203 = sbr.rel (%p200) target = $region12
      $region11: #{tpu_custom_call.1} parent=5 // pred_region
        %s204 = ssub.s32 %s21, 1
        // Predicated region
        $region13: #{tpu_custom_call.1} parent=11 // pred_check
          %p205 = pneg %p106
        $region14: #{tpu_custom_call.1} parent=11 // pred_check_branch
          %207 = sbr.rel (%p205) target = $region16
        $region15: #{tpu_custom_call.1} parent=11 // pred_region
          _
        $region16: #{tpu_custom_call.1} parent=11 // pred_fallthru
          _
        // Predicated region
        $region17: #{tpu_custom_call.1} parent=11 // pred_check
          %p208 = pneg %p127
        $region18: #{tpu_custom_call.1} parent=11 // pred_check_branch
          %210 = sbr.rel (%p208) target = $region20
        $region19: #{tpu_custom_call.1} parent=11 // pred_region
          _
        $region20: #{tpu_custom_call.1} parent=11 // pred_fallthru
          _
      $region12: #{tpu_custom_call.1} parent=5 // pred_fallthru
        _
      %p211 = scmp.lt.s32.totalorder %s21, 8
      // Predicated region
      $region21: #{tpu_custom_call.1} parent=5 // pred_check
        %p212 = pneg %p211
      $region22: #{tpu_custom_call.1} parent=5 // pred_check_branch
        %214 = sbr.rel (%p212) target = $region24
      $region23: #{tpu_custom_call.1} parent=5 // pred_region
        // Predicated region
        $region25: #{tpu_custom_call.1} parent=23 // pred_check
          %p215 = pneg %p53
        $region26: #{tpu_custom_call.1} parent=23 // pred_check_branch
          %217 = sbr.rel (%p215) target = $region28
        $region27: #{tpu_custom_call.1} parent=23 // pred_region
          %s218 = sand.u32 %s43, 1
          %s219 = scalar_lea.sflag [#allocation8], %s218
          %s220 = sand.u32 %s43, 1
          %s221 = smul.addr %s220, 16
          %s222 = scalar_lea.vmem [#allocation7], %s221
          %s223 = smul.u32 2, %s29
          %s225 = ssub.s32 256, 256
          %226 = vsyncadd %s219, %s225
          %s227 = smul.addr %s223, 128
          %s228 = scalar_lea.hbm %s0, %s227
          %s229 = sshll.u32 %s222, 4
          %s230 = int_to_ptr.vmem [resolvable:$true] %s229
          %235 = dma.hbm_to_vmem [thread:$0]  %s228, 256, %s230, %s219, 128, 128, 8
        $region28: #{tpu_custom_call.1} parent=23 // pred_fallthru
          _
        // Predicated region
        $region29: #{tpu_custom_call.1} parent=23 // pred_check
          %p236 = pneg %p79
        $region30: #{tpu_custom_call.1} parent=23 // pred_check_branch
          %238 = sbr.rel (%p236) target = $region32
        $region31: #{tpu_custom_call.1} parent=23 // pred_region
          %s239 = sand.u32 %s69, 1
          %s240 = scalar_lea.sflag [#allocation11], %s239
          %s241 = sand.u32 %s69, 1
          %s242 = smul.addr %s241, 16
          %s243 = scalar_lea.vmem [#allocation10], %s242
          %s244 = smul.u32 2, %s29
          %s246 = ssub.s32 256, 256
          %247 = vsyncadd %s240, %s246
          %s248 = smul.addr %s244, 128
          %s249 = scalar_lea.hbm %s1, %s248
          %s250 = sshll.u32 %s243, 4
          %s251 = int_to_ptr.vmem [resolvable:$true] %s250
          %256 = dma.hbm_to_vmem [thread:$0]  %s249, 256, %s251, %s240, 128, 128, 8
        $region32: #{tpu_custom_call.1} parent=23 // pred_fallthru
          _
      $region24: #{tpu_custom_call.1} parent=5 // pred_fallthru
        _
      %p257 = scmp.le.s32.totalorder 1, %s21
      %p258 = scmp.lt.s32.totalorder %s21, 9
      %p259 = pnand %p257, %p258
      %p260 = pneg %p259
      // Predicated region
      $region33: #{tpu_custom_call.1} parent=5 // pred_check
        _
      $region34: #{tpu_custom_call.1} parent=5 // pred_check_branch
        %262 = sbr.rel (%p259) target = $region36
      $region35: #{tpu_custom_call.1} parent=5 // pred_region
        %s263 = ssub.s32 %s21, 1
        %s264 = sand.u32 %s46, 1
        %s265 = scalar_lea.sflag [#allocation8], %s264
        %s266 = sand.u32 %s46, 1
        %s267 = smul.addr %s266, 16
        %s268 = scalar_lea.vmem [#allocation7], %s267
        // Predicated region
        $region37: #{tpu_custom_call.1} parent=35 // pred_check
          %p269 = pneg %p59
        $region38: #{tpu_custom_call.1} parent=35 // pred_check_branch
          %271 = sbr.rel (%p269) target = $region40
        $region39: #{tpu_custom_call.1} parent=35 // pred_region
          %272 = dma.done %s265, 256
        $region40: #{tpu_custom_call.1} parent=35 // pred_fallthru
          _
        %s273 = sand.u32 %s72, 1
        %s274 = scalar_lea.sflag [#allocation11], %s273
        %s275 = sand.u32 %s72, 1
        %s276 = smul.addr %s275, 16
        %s277 = scalar_lea.vmem [#allocation10], %s276
        // Predicated region
        $region41: #{tpu_custom_call.1} parent=35 // pred_check
          %p278 = pneg %p85
        $region42: #{tpu_custom_call.1} parent=35 // pred_check_branch
          %280 = sbr.rel (%p278) target = $region44
        $region43: #{tpu_custom_call.1} parent=35 // pred_region
          %281 = dma.done %s274, 256
        $region44: #{tpu_custom_call.1} parent=35 // pred_fallthru
          _
        %s282 = sand.u32 %s46, 1
        %s283 = scalar_lea.sflag [#allocation8], %s282
        %s284 = sand.u32 %s46, 1
        %s285 = smul.addr %s284, 16
        %s286 = scalar_lea.vmem [#allocation7], %s285
        %p287 = pneg %p59
        %p288 = pneg %p56
        %s289 = sand.u32 %s72, 1
        %s290 = scalar_lea.sflag [#allocation11], %s289
        %s291 = sand.u32 %s72, 1
        %s292 = smul.addr %s291, 16
        %s293 = scalar_lea.vmem [#allocation10], %s292
        %p294 = pneg %p85
        %p295 = pneg %p82
        %p296 = pneg %p106
        %p297 = pneg %p103
        %p298 = pneg %p127
        %p299 = pneg %p124
        %p300 = pneg %p148
        %p301 = pneg %p145
        %p302 = pneg %p169
        %p303 = pneg %p166
        %p304 = pneg %p190
        %p305 = pneg %p187
        %s306 = smul.u32 2, %s31
        %s307 = smul.u32 2, %s31
        %v308 = vld [vmem:[%s268] sm:$0xff]
        %v309 = vld [vmem:[%s268 + $0x8] sm:$0xff]
        %v310 = vld [vmem:[%s277] sm:$0xff]
        %v311 = vld [vmem:[%s277 + $0x8] sm:$0xff]
        %v312 = vsub.f32 %v308, %v310
        %v313 = vsub.f32 %v309, %v311
        %v314 = vand.u32 2147483647, %v312
        %v315 = vand.u32 2147483647, %v313
        %p316 = scmp.eq.s32.totalorder %s30, 0
        // Predicated region
        $region45: #{tpu_custom_call.1} parent=35 // pred_check
          %p317 = pneg %p316
        $region46: #{tpu_custom_call.1} parent=35 // pred_check_branch
          %319 = sbr.rel (%p317) target = $region48
        $region47: #{tpu_custom_call.1} parent=35 // pred_region
          %p320 = scmp.eq.s32.totalorder %s31, 0
          // Predicated region
          $region49: #{tpu_custom_call.1} parent=47 // pred_check
            %p321 = pneg %p320
          $region50: #{tpu_custom_call.1} parent=47 // pred_check_branch
            %323 = sbr.rel (%p321) target = $region52
          $region51: #{tpu_custom_call.1} parent=47 // pred_region
            %324 = vst [vmem:[#allocation2] sm:$0x1] 0.0
            %325 = vst [vmem:[#allocation3] sm:$0x1] 0.0
          $region52: #{tpu_custom_call.1} parent=47 // pred_fallthru
            _
          %v326 = vld [vmem:[#allocation2] sm:$0x1]
          %v327 = vadd.f32 %v314, %v315
          %v328 = vrot.slane %v327, 4
          %v329 = vadd.f32 %v327, %v328
          %v330 = vrot.slane %v329, 2
          %v331 = vadd.f32 %v329, %v330
          %v332 = vrot.slane %v331, 1
          %v333 = vadd.f32 %v331, %v332
          %v334 = vadd.f32 %v326, %v333
          %335 = vst [vmem:[#allocation2] sm:$0x1] %v334
          %v336 = vld [vmem:[#allocation3] sm:$0x1]
          %v337 = vmul.f32 %v314, %v314
          %v338 = vmul.f32 %v315, %v315
          %v339 = vadd.f32 %v337, %v338
          %v340 = vrot.slane %v339, 4
          %v341 = vadd.f32 %v339, %v340
          %v342 = vrot.slane %v341, 2
          %v343 = vadd.f32 %v341, %v342
          %v344 = vrot.slane %v343, 1
          %v345 = vadd.f32 %v343, %v344
          %v346 = vadd.f32 %v336, %v345
          %347 = vst [vmem:[#allocation3] sm:$0x1] %v346
          %p348 = scmp.eq.s32.totalorder %s31, 3
          // Predicated region
          $region53: #{tpu_custom_call.1} parent=47 // pred_check
            %p349 = pneg %p348
          $region54: #{tpu_custom_call.1} parent=47 // pred_check_branch
            %351 = sbr.rel (%p349) target = $region56
          $region55: #{tpu_custom_call.1} parent=47 // pred_region
            %v352 = vld [vmem:[#allocation2] sm:$0x1]
            %v353 = vld [vmem:[#allocation3] sm:$0x1]
            %354 = vrot.lane.b32.xlu0 %v352, 8
            %v355 = vpop.permute.xlu0 %354
            %v356 = vadd.f32 %v352, %v355
            %357 = vrot.lane.b32.xlu0 %v353, 8
            %v358 = vpop.permute.xlu0 %357
            %v359 = vadd.f32 %v353, %v358
            %360 = vrot.lane.b32.xlu0 %v356, 16
            %v361 = vpop.permute.xlu0 %360
            %v362 = vadd.f32 %v356, %v361
            %363 = vrot.lane.b32.xlu0 %v359, 16
            %v364 = vpop.permute.xlu0 %363
            %v365 = vadd.f32 %v359, %v364
            %366 = vrot.lane.b32.xlu0 %v362, 32
            %v367 = vpop.permute.xlu0 %366
            %v368 = vadd.f32 %v362, %v367
            %369 = vrot.lane.b32.xlu0 %v365, 32
            %v370 = vpop.permute.xlu0 %369
            %v371 = vadd.f32 %v365, %v370
            %372 = vrot.lane.b32.xlu0 %v368, 64
            %v373 = vpop.permute.xlu0 %372
            %v374 = vadd.f32 %v368, %v373
            %375 = vrot.lane.b32.xlu0 %v371, 64
            %v376 = vpop.permute.xlu0 %375
            %v377 = vadd.f32 %v371, %v376
            %v378 = vmul.f32 %v374, 0.0009765625
            %v379 = vmul.f32 %v378, 1024.0
            %v380 = vmul.f32 %v379, %v378
            %v381 = vsub.f32 %v377, %v380
            %v382 = vmul.f32 %v381, 0.0009775171
            %vm383 = vcmp.ne.f32.partialorder %v382, %v382
            %v384 = vsel %vm383, 1.0, 0.0
            %vm385 = vcmask 1040384
            %v386 = vsel %vm385, %v384, -inf
            %387 = vmax.xlane.f32.xlu0 %v386
            %v388 = vpop.xlane.xlu0 %387
            %vm389 = vcmp.gt.f32.partialorder %v388, 0.0
            %v390 = vld [vmem:[%s2] sm:$0x1]
            %v391 = vld [vmem:[%s3] sm:$0x1]
            %v392 = vmul.f32 %v390, 0.9
            %v393 = vmul.f32 %v378, 0.1
            %v394 = vadd.f32 %v392, %v393
            %v395 = vsel %vm389, 1, 0
            %v396 = vlaneseq
            %v397 = vshrl.u32 %v396, 7
            %v398 = vsub.s32 0, %v397
            %v399 = vrot.slane %v395, %v398
            %vm400 = vcmp.eq.s32.totalorder %v399, 1
            %v402 = vlaneseq
            %v403 = vshrl.u32 %v402, 7
            %v404 = vsub.s32 0, %v403
            %v405 = vrot.slane %v390, %v404
            %407 = vbcast.lane.b32.xlu0 %v405, 256
            %v408 = vpop.permute.xlu0 %407
            %s410 = sor.u32 256, 8
            %411 = vbcast.lane.b32.xlu0 %v405, %s410
            %v412 = vpop.permute.xlu0 %411
            %s414 = sor.u32 256, 16
            %415 = vbcast.lane.b32.xlu0 %v405, %s414
            %v416 = vpop.permute.xlu0 %415
            %s418 = sor.u32 256, 24
            %419 = vbcast.lane.b32.xlu0 %v405, %s418
            %v420 = vpop.permute.xlu0 %419
            %s422 = sor.u32 256, 32
            %423 = vbcast.lane.b32.xlu0 %v405, %s422
            %v424 = vpop.permute.xlu0 %423
            %s426 = sor.u32 256, 40
            %427 = vbcast.lane.b32.xlu0 %v405, %s426
            %v428 = vpop.permute.xlu0 %427
            %s430 = sor.u32 256, 48
            %431 = vbcast.lane.b32.xlu0 %v405, %s430
            %v432 = vpop.permute.xlu0 %431
            %s434 = sor.u32 256, 56
            %435 = vbcast.lane.b32.xlu0 %v405, %s434
            %v436 = vpop.permute.xlu0 %435
            %s438 = sor.u32 256, 64
            %439 = vbcast.lane.b32.xlu0 %v405, %s438
            %v440 = vpop.permute.xlu0 %439
            %s442 = sor.u32 256, 72
            %443 = vbcast.lane.b32.xlu0 %v405, %s442
            %v444 = vpop.permute.xlu0 %443
            %s446 = sor.u32 256, 80
            %447 = vbcast.lane.b32.xlu0 %v405, %s446
            %v448 = vpop.permute.xlu0 %447
            %s450 = sor.u32 256, 88
            %451 = vbcast.lane.b32.xlu0 %v405, %s450
            %v452 = vpop.permute.xlu0 %451
            %s454 = sor.u32 256, 96
            %455 = vbcast.lane.b32.xlu0 %v405, %s454
            %v456 = vpop.permute.xlu0 %455
            %s458 = sor.u32 256, 104
            %459 = vbcast.lane.b32.xlu0 %v405, %s458
            %v460 = vpop.permute.xlu0 %459
            %s462 = sor.u32 256, 112
            %463 = vbcast.lane.b32.xlu0 %v405, %s462
            %v464 = vpop.permute.xlu0 %463
            %s466 = sor.u32 256, 120
            %467 = vbcast.lane.b32.xlu0 %v405, %s466
            %v468 = vpop.permute.xlu0 %467
            %v486 = vlaneseq
            %v487 = vshrl.u32 %v486, 7
            %v488 = vsub.s32 0, %v487
            %v489 = vrot.slane %v394, %v488
            %491 = vbcast.lane.b32.xlu0 %v489, 256
            %v492 = vpop.permute.xlu0 %491
            %s494 = sor.u32 256, 8
            %495 = vbcast.lane.b32.xlu0 %v489, %s494
            %v496 = vpop.permute.xlu0 %495
            %s498 = sor.u32 256, 16
            %499 = vbcast.lane.b32.xlu0 %v489, %s498
            %v500 = vpop.permute.xlu0 %499
            %s502 = sor.u32 256, 24
            %503 = vbcast.lane.b32.xlu0 %v489, %s502
            %v504 = vpop.permute.xlu0 %503
            %s506 = sor.u32 256, 32
            %507 = vbcast.lane.b32.xlu0 %v489, %s506
            %v508 = vpop.permute.xlu0 %507
            %s510 = sor.u32 256, 40
            %511 = vbcast.lane.b32.xlu0 %v489, %s510
            %v512 = vpop.permute.xlu0 %511
            %s514 = sor.u32 256, 48
            %515 = vbcast.lane.b32.xlu0 %v489, %s514
            %v516 = vpop.permute.xlu0 %515
            %s518 = sor.u32 256, 56
            %519 = vbcast.lane.b32.xlu0 %v489, %s518
            %v520 = vpop.permute.xlu0 %519
            %s522 = sor.u32 256, 64
            %523 = vbcast.lane.b32.xlu0 %v489, %s522
            %v524 = vpop.permute.xlu0 %523
            %s526 = sor.u32 256, 72
            %527 = vbcast.lane.b32.xlu0 %v489, %s526
            %v528 = vpop.permute.xlu0 %527
            %s530 = sor.u32 256, 80
            %531 = vbcast.lane.b32.xlu0 %v489, %s530
            %v532 = vpop.permute.xlu0 %531
            %s534 = sor.u32 256, 88
            %535 = vbcast.lane.b32.xlu0 %v489, %s534
            %v536 = vpop.permute.xlu0 %535
            %s538 = sor.u32 256, 96
            %539 = vbcast.lane.b32.xlu0 %v489, %s538
            %v540 = vpop.permute.xlu0 %539
            %s542 = sor.u32 256, 104
            %543 = vbcast.lane.b32.xlu0 %v489, %s542
            %v544 = vpop.permute.xlu0 %543
            %s546 = sor.u32 256, 112
            %547 = vbcast.lane.b32.xlu0 %v489, %s546
            %v548 = vpop.permute.xlu0 %547
            %s550 = sor.u32 256, 120
            %551 = vbcast.lane.b32.xlu0 %v489, %s550
            %v552 = vpop.permute.xlu0 %551
            %v569 = vsel %vm400, %v408, %v492
            %v570 = vsel %vm400, %v412, %v496
            %v571 = vsel %vm400, %v416, %v500
            %v572 = vsel %vm400, %v420, %v504
            %v573 = vsel %vm400, %v424, %v508
            %v574 = vsel %vm400, %v428, %v512
            %v575 = vsel %vm400, %v432, %v516
            %v576 = vsel %vm400, %v436, %v520
            %v577 = vsel %vm400, %v440, %v524
            %v578 = vsel %vm400, %v444, %v528
            %v579 = vsel %vm400, %v448, %v532
            %v580 = vsel %vm400, %v452, %v536
            %v581 = vsel %vm400, %v456, %v540
            %v582 = vsel %vm400, %v460, %v544
            %v583 = vsel %vm400, %v464, %v548
            %v584 = vsel %vm400, %v468, %v552
            %v585 = vmul.f32 %v391, 0.9
            %v586 = vmul.f32 %v382, 0.1
            %v587 = vadd.f32 %v585, %v586
            %v589 = vlaneseq
            %v590 = vshrl.u32 %v589, 7
            %v591 = vsub.s32 0, %v590
            %v592 = vrot.slane %v391, %v591
            %594 = vbcast.lane.b32.xlu0 %v592, 256
            %v595 = vpop.permute.xlu0 %594
            %s597 = sor.u32 256, 8
            %598 = vbcast.lane.b32.xlu0 %v592, %s597
            %v599 = vpop.permute.xlu0 %598
            %s601 = sor.u32 256, 16
            %602 = vbcast.lane.b32.xlu0 %v592, %s601
            %v603 = vpop.permute.xlu0 %602
            %s605 = sor.u32 256, 24
            %606 = vbcast.lane.b32.xlu0 %v592, %s605
            %v607 = vpop.permute.xlu0 %606
            %s609 = sor.u32 256, 32
            %610 = vbcast.lane.b32.xlu0 %v592, %s609
            %v611 = vpop.permute.xlu0 %610
            %s613 = sor.u32 256, 40
            %614 = vbcast.lane.b32.xlu0 %v592, %s613
            %v615 = vpop.permute.xlu0 %614
            %s617 = sor.u32 256, 48
            %618 = vbcast.lane.b32.xlu0 %v592, %s617
            %v619 = vpop.permute.xlu0 %618
            %s621 = sor.u32 256, 56
            %622 = vbcast.lane.b32.xlu0 %v592, %s621
            %v623 = vpop.permute.xlu0 %622
            %s625 = sor.u32 256, 64
            %626 = vbcast.lane.b32.xlu0 %v592, %s625
            %v627 = vpop.permute.xlu0 %626
            %s629 = sor.u32 256, 72
            %630 = vbcast.lane.b32.xlu0 %v592, %s629
            %v631 = vpop.permute.xlu0 %630
            %s633 = sor.u32 256, 80
            %634 = vbcast.lane.b32.xlu0 %v592, %s633
            %v635 = vpop.permute.xlu0 %634
            %s637 = sor.u32 256, 88
            %638 = vbcast.lane.b32.xlu0 %v592, %s637
            %v639 = vpop.permute.xlu0 %638
            %s641 = sor.u32 256, 96
            %642 = vbcast.lane.b32.xlu0 %v592, %s641
            %v643 = vpop.permute.xlu0 %642
            %s645 = sor.u32 256, 104
            %646 = vbcast.lane.b32.xlu0 %v592, %s645
            %v647 = vpop.permute.xlu0 %646
            %s649 = sor.u32 256, 112
            %650 = vbcast.lane.b32.xlu0 %v592, %s649
            %v651 = vpop.permute.xlu0 %650
            %s653 = sor.u32 256, 120
            %654 = vbcast.lane.b32.xlu0 %v592, %s653
            %v655 = vpop.permute.xlu0 %654
            %v673 = vlaneseq
            %v674 = vshrl.u32 %v673, 7
            %v675 = vsub.s32 0, %v674
            %v676 = vrot.slane %v587, %v675
            %678 = vbcast.lane.b32.xlu0 %v676, 256
            %v679 = vpop.permute.xlu0 %678
            %s681 = sor.u32 256, 8
            %682 = vbcast.lane.b32.xlu0 %v676, %s681
            %v683 = vpop.permute.xlu0 %682
            %s685 = sor.u32 256, 16
            %686 = vbcast.lane.b32.xlu0 %v676, %s685
            %v687 = vpop.permute.xlu0 %686
            %s689 = sor.u32 256, 24
            %690 = vbcast.lane.b32.xlu0 %v676, %s689
            %v691 = vpop.permute.xlu0 %690
            %s693 = sor.u32 256, 32
            %694 = vbcast.lane.b32.xlu0 %v676, %s693
            %v695 = vpop.permute.xlu0 %694
            %s697 = sor.u32 256, 40
            %698 = vbcast.lane.b32.xlu0 %v676, %s697
            %v699 = vpop.permute.xlu0 %698
            %s701 = sor.u32 256, 48
            %702 = vbcast.lane.b32.xlu0 %v676, %s701
            %v703 = vpop.permute.xlu0 %702
            %s705 = sor.u32 256, 56
            %706 = vbcast.lane.b32.xlu0 %v676, %s705
            %v707 = vpop.permute.xlu0 %706
            %s709 = sor.u32 256, 64
            %710 = vbcast.lane.b32.xlu0 %v676, %s709
            %v711 = vpop.permute.xlu0 %710
            %s713 = sor.u32 256, 72
            %714 = vbcast.lane.b32.xlu0 %v676, %s713
            %v715 = vpop.permute.xlu0 %714
            %s717 = sor.u32 256, 80
            %718 = vbcast.lane.b32.xlu0 %v676, %s717
            %v719 = vpop.permute.xlu0 %718
            %s721 = sor.u32 256, 88
            %722 = vbcast.lane.b32.xlu0 %v676, %s721
            %v723 = vpop.permute.xlu0 %722
            %s725 = sor.u32 256, 96
            %726 = vbcast.lane.b32.xlu0 %v676, %s725
            %v727 = vpop.permute.xlu0 %726
            %s729 = sor.u32 256, 104
            %730 = vbcast.lane.b32.xlu0 %v676, %s729
            %v731 = vpop.permute.xlu0 %730
            %s733 = sor.u32 256, 112
            %734 = vbcast.lane.b32.xlu0 %v676, %s733
            %v735 = vpop.permute.xlu0 %734
            %s737 = sor.u32 256, 120
            %738 = vbcast.lane.b32.xlu0 %v676, %s737
            %v739 = vpop.permute.xlu0 %738
            %v756 = vsel %vm400, %v595, %v679
            %v757 = vsel %vm400, %v599, %v683
            %v758 = vsel %vm400, %v603, %v687
            %v759 = vsel %vm400, %v607, %v691
            %v760 = vsel %vm400, %v611, %v695
            %v761 = vsel %vm400, %v615, %v699
            %v762 = vsel %vm400, %v619, %v703
            %v763 = vsel %vm400, %v623, %v707
            %v764 = vsel %vm400, %v627, %v711
            %v765 = vsel %vm400, %v631, %v715
            %v766 = vsel %vm400, %v635, %v719
            %v767 = vsel %vm400, %v639, %v723
            %v768 = vsel %vm400, %v643, %v727
            %v769 = vsel %vm400, %v647, %v731
            %v770 = vsel %vm400, %v651, %v735
            %v771 = vsel %vm400, %v655, %v739
            %788 = vset.pattern.permute.xlu0 0
            %789 = vperm.xlu0 %788, %v569
            %v790 = vpop.permute.xlu0 %789
            %791 = vset.pattern.permute.xlu0 0
            %792 = vperm.xlu0 %791, %v570
            %v793 = vpop.permute.xlu0 %792
            %794 = vset.pattern.permute.xlu0 0
            %795 = vperm.xlu0 %794, %v571
            %v796 = vpop.permute.xlu0 %795
            %797 = vset.pattern.permute.xlu0 0
            %798 = vperm.xlu0 %797, %v572
            %v799 = vpop.permute.xlu0 %798
            %800 = vset.pattern.permute.xlu0 0
            %801 = vperm.xlu0 %800, %v573
            %v802 = vpop.permute.xlu0 %801
            %803 = vset.pattern.permute.xlu0 0
            %804 = vperm.xlu0 %803, %v574
            %v805 = vpop.permute.xlu0 %804
            %806 = vset.pattern.permute.xlu0 0
            %807 = vperm.xlu0 %806, %v575
            %v808 = vpop.permute.xlu0 %807
            %809 = vset.pattern.permute.xlu0 0
            %810 = vperm.xlu0 %809, %v576
            %v811 = vpop.permute.xlu0 %810
            %812 = vset.pattern.permute.xlu0 0
            %813 = vperm.xlu0 %812, %v577
            %v814 = vpop.permute.xlu0 %813
            %815 = vset.pattern.permute.xlu0 0
            %816 = vperm.xlu0 %815, %v578
            %v817 = vpop.permute.xlu0 %816
            %818 = vset.pattern.permute.xlu0 0
            %819 = vperm.xlu0 %818, %v579
            %v820 = vpop.permute.xlu0 %819
            %821 = vset.pattern.permute.xlu0 0
            %822 = vperm.xlu0 %821, %v580
            %v823 = vpop.permute.xlu0 %822
            %824 = vset.pattern.permute.xlu0 0
            %825 = vperm.xlu0 %824, %v581
            %v826 = vpop.permute.xlu0 %825
            %827 = vset.pattern.permute.xlu0 0
            %828 = vperm.xlu0 %827, %v582
            %v829 = vpop.permute.xlu0 %828
            %830 = vset.pattern.permute.xlu0 0
            %831 = vperm.xlu0 %830, %v583
            %v832 = vpop.permute.xlu0 %831
            %833 = vset.pattern.permute.xlu0 0
            %834 = vperm.xlu0 %833, %v584
            %v835 = vpop.permute.xlu0 %834
            %v836 = vlaneseq
            %v837 = vand.u32 %v836, 127
            %v838 = vlaneseq
            %v839 = vshrl.u32 %v838, 7
            %v840 = vsub.s32 %v837, %v839
            %v841 = vrot.slane %v790, %v840
            %v842 = vadd.s32 %v837, 4294967288
            %v843 = vlaneseq
            %v844 = vshrl.u32 %v843, 7
            %v845 = vsub.s32 %v842, %v844
            %v846 = vrot.slane %v793, %v845
            %vm847 = vcmask 130112
            %v848 = vsel %vm847, %v846, %v841
            %v849 = vadd.s32 %v837, 4294967280
            %v850 = vlaneseq
            %v851 = vshrl.u32 %v850, 7
            %v852 = vsub.s32 %v849, %v851
            %v853 = vrot.slane %v796, %v852
            %vm854 = vcmask 195712
            %v855 = vsel %vm854, %v853, %v848
            %v856 = vadd.s32 %v837, 4294967272
            %v857 = vlaneseq
            %v858 = vshrl.u32 %v857, 7
            %v859 = vsub.s32 %v856, %v858
            %v860 = vrot.slane %v799, %v859
            %vm861 = vcmask 261312
            %v862 = vsel %vm861, %v860, %v855
            %v863 = vadd.s32 %v837, 4294967264
            %v864 = vlaneseq
            %v865 = vshrl.u32 %v864, 7
            %v866 = vsub.s32 %v863, %v865
            %v867 = vrot.slane %v802, %v866
            %vm868 = vcmask 326912
            %v869 = vsel %vm868, %v867, %v862
            %v870 = vadd.s32 %v837, 4294967256
            %v871 = vlaneseq
            %v872 = vshrl.u32 %v871, 7
            %v873 = vsub.s32 %v870, %v872
            %v874 = vrot.slane %v805, %v873
            %vm875 = vcmask 392512
            %v876 = vsel %vm875, %v874, %v869
            %v877 = vadd.s32 %v837, 4294967248
            %v878 = vlaneseq
            %v879 = vshrl.u32 %v878, 7
            %v880 = vsub.s32 %v877, %v879
            %v881 = vrot.slane %v808, %v880
            %vm882 = vcmask 458112
            %v883 = vsel %vm882, %v881, %v876
            %v884 = vadd.s32 %v837, 4294967240
            %v885 = vlaneseq
            %v886 = vshrl.u32 %v885, 7
            %v887 = vsub.s32 %v884, %v886
            %v888 = vrot.slane %v811, %v887
            %vm889 = vcmask 523712
            %v890 = vsel %vm889, %v888, %v883
            %v891 = vadd.s32 %v837, 4294967232
            %v892 = vlaneseq
            %v893 = vshrl.u32 %v892, 7
            %v894 = vsub.s32 %v891, %v893
            %v895 = vrot.slane %v814, %v894
            %vm896 = vcmask 589312
            %v897 = vsel %vm896, %v895, %v890
            %v898 = vadd.s32 %v837, 4294967224
            %v899 = vlaneseq
            %v900 = vshrl.u32 %v899, 7
            %v901 = vsub.s32 %v898, %v900
            %v902 = vrot.slane %v817, %v901
            %vm903 = vcmask 654912
            %v904 = vsel %vm903, %v902, %v897
            %v905 = vadd.s32 %v837, 4294967216
            %v906 = vlaneseq
            %v907 = vshrl.u32 %v906, 7
            %v908 = vsub.s32 %v905, %v907
            %v909 = vrot.slane %v820, %v908
            %vm910 = vcmask 720512
            %v911 = vsel %vm910, %v909, %v904
            %v912 = vadd.s32 %v837, 4294967208
            %v913 = vlaneseq
            %v914 = vshrl.u32 %v913, 7
            %v915 = vsub.s32 %v912, %v914
            %v916 = vrot.slane %v823, %v915
            %vm917 = vcmask 786112
            %v918 = vsel %vm917, %v916, %v911
            %v919 = vadd.s32 %v837, 4294967200
            %v920 = vlaneseq
            %v921 = vshrl.u32 %v920, 7
            %v922 = vsub.s32 %v919, %v921
            %v923 = vrot.slane %v826, %v922
            %vm924 = vcmask 851712
            %v925 = vsel %vm924, %v923, %v918
            %v926 = vadd.s32 %v837, 4294967192
            %v927 = vlaneseq
            %v928 = vshrl.u32 %v927, 7
            %v929 = vsub.s32 %v926, %v928
            %v930 = vrot.slane %v829, %v929
            %vm931 = vcmask 917312
            %v932 = vsel %vm931, %v930, %v925
            %v933 = vadd.s32 %v837, 4294967184
            %v934 = vlaneseq
            %v935 = vshrl.u32 %v934, 7
            %v936 = vsub.s32 %v933, %v935
            %v937 = vrot.slane %v832, %v936
            %vm938 = vcmask 982912
            %v939 = vsel %vm938, %v937, %v932
            %v940 = vadd.s32 %v837, 4294967176
            %v941 = vlaneseq
            %v942 = vshrl.u32 %v941, 7
            %v943 = vsub.s32 %v940, %v942
            %v944 = vrot.slane %v835, %v943
            %vm945 = vcmask 1048512
            %v946 = vsel %vm945, %v944, %v939
            %948 = vst [vmem:[#allocation13] sm:$0x1] %v946
            %965 = vset.pattern.permute.xlu0 0
            %966 = vperm.xlu0 %965, %v756
            %v967 = vpop.permute.xlu0 %966
            %968 = vset.pattern.permute.xlu0 0
            %969 = vperm.xlu0 %968, %v757
            %v970 = vpop.permute.xlu0 %969
            %971 = vset.pattern.permute.xlu0 0
            %972 = vperm.xlu0 %971, %v758
            %v973 = vpop.permute.xlu0 %972
            %974 = vset.pattern.permute.xlu0 0
            %975 = vperm.xlu0 %974, %v759
            %v976 = vpop.permute.xlu0 %975
            %977 = vset.pattern.permute.xlu0 0
            %978 = vperm.xlu0 %977, %v760
            %v979 = vpop.permute.xlu0 %978
            %980 = vset.pattern.permute.xlu0 0
            %981 = vperm.xlu0 %980, %v761
            %v982 = vpop.permute.xlu0 %981
            %983 = vset.pattern.permute.xlu0 0
            %984 = vperm.xlu0 %983, %v762
            %v985 = vpop.permute.xlu0 %984
            %986 = vset.pattern.permute.xlu0 0
            %987 = vperm.xlu0 %986, %v763
            %v988 = vpop.permute.xlu0 %987
            %989 = vset.pattern.permute.xlu0 0
            %990 = vperm.xlu0 %989, %v764
            %v991 = vpop.permute.xlu0 %990
            %992 = vset.pattern.permute.xlu0 0
            %993 = vperm.xlu0 %992, %v765
            %v994 = vpop.permute.xlu0 %993
            %995 = vset.pattern.permute.xlu0 0
            %996 = vperm.xlu0 %995, %v766
            %v997 = vpop.permute.xlu0 %996
            %998 = vset.pattern.permute.xlu0 0
            %999 = vperm.xlu0 %998, %v767
            %v1000 = vpop.permute.xlu0 %999
            %1001 = vset.pattern.permute.xlu0 0
            %1002 = vperm.xlu0 %1001, %v768
            %v1003 = vpop.permute.xlu0 %1002
            %1004 = vset.pattern.permute.xlu0 0
            %1005 = vperm.xlu0 %1004, %v769
            %v1006 = vpop.permute.xlu0 %1005
            %1007 = vset.pattern.permute.xlu0 0
            %1008 = vperm.xlu0 %1007, %v770
            %v1009 = vpop.permute.xlu0 %1008
            %1010 = vset.pattern.permute.xlu0 0
            %1011 = vperm.xlu0 %1010, %v771
            %v1012 = vpop.permute.xlu0 %1011
            %v1013 = vlaneseq
            %v1014 = vshrl.u32 %v1013, 7
            %v1015 = vsub.s32 %v837, %v1014
            %v1016 = vrot.slane %v967, %v1015
            %v1017 = vlaneseq
            %v1018 = vshrl.u32 %v1017, 7
            %v1019 = vsub.s32 %v842, %v1018
            %v1020 = vrot.slane %v970, %v1019
            %v1021 = vsel %vm847, %v1020, %v1016
            %v1022 = vlaneseq
            %v1023 = vshrl.u32 %v1022, 7
            %v1024 = vsub.s32 %v849, %v1023
            %v1025 = vrot.slane %v973, %v1024
            %v1026 = vsel %vm854, %v1025, %v1021
            %v1027 = vlaneseq
            %v1028 = vshrl.u32 %v1027, 7
            %v1029 = vsub.s32 %v856, %v1028
            %v1030 = vrot.slane %v976, %v1029
            %v1031 = vsel %vm861, %v1030, %v1026
            %v1032 = vlaneseq
            %v1033 = vshrl.u32 %v1032, 7
            %v1034 = vsub.s32 %v863, %v1033
            %v1035 = vrot.slane %v979, %v1034
            %v1036 = vsel %vm868, %v1035, %v1031
            %v1037 = vlaneseq
            %v1038 = vshrl.u32 %v1037, 7
            %v1039 = vsub.s32 %v870, %v1038
            %v1040 = vrot.slane %v982, %v1039
            %v1041 = vsel %vm875, %v1040, %v1036
            %v1042 = vlaneseq
            %v1043 = vshrl.u32 %v1042, 7
            %v1044 = vsub.s32 %v877, %v1043
            %v1045 = vrot.slane %v985, %v1044
            %v1046 = vsel %vm882, %v1045, %v1041
            %v1047 = vlaneseq
            %v1048 = vshrl.u32 %v1047, 7
            %v1049 = vsub.s32 %v884, %v1048
            %v1050 = vrot.slane %v988, %v1049
            %v1051 = vsel %vm889, %v1050, %v1046
            %v1052 = vlaneseq
            %v1053 = vshrl.u32 %v1052, 7
            %v1054 = vsub.s32 %v891, %v1053
            %v1055 = vrot.slane %v991, %v1054
            %v1056 = vsel %vm896, %v1055, %v1051
            %v1057 = vlaneseq
            %v1058 = vshrl.u32 %v1057, 7
            %v1059 = vsub.s32 %v898, %v1058
            %v1060 = vrot.slane %v994, %v1059
            %v1061 = vsel %vm903, %v1060, %v1056
            %v1062 = vlaneseq
            %v1063 = vshrl.u32 %v1062, 7
            %v1064 = vsub.s32 %v905, %v1063
            %v1065 = vrot.slane %v997, %v1064
            %v1066 = vsel %vm910, %v1065, %v1061
            %v1067 = vlaneseq
            %v1068 = vshrl.u32 %v1067, 7
            %v1069 = vsub.s32 %v912, %v1068
            %v1070 = vrot.slane %v1000, %v1069
            %v1071 = vsel %vm917, %v1070, %v1066
            %v1072 = vlaneseq
            %v1073 = vshrl.u32 %v1072, 7
            %v1074 = vsub.s32 %v919, %v1073
            %v1075 = vrot.slane %v1003, %v1074
            %v1076 = vsel %vm924, %v1075, %v1071
            %v1077 = vlaneseq
            %v1078 = vshrl.u32 %v1077, 7
            %v1079 = vsub.s32 %v926, %v1078
            %v1080 = vrot.slane %v1006, %v1079
            %v1081 = vsel %vm931, %v1080, %v1076
            %v1082 = vlaneseq
            %v1083 = vshrl.u32 %v1082, 7
            %v1084 = vsub.s32 %v933, %v1083
            %v1085 = vrot.slane %v1009, %v1084
            %v1086 = vsel %vm938, %v1085, %v1081
            %v1087 = vlaneseq
            %v1088 = vshrl.u32 %v1087, 7
            %v1089 = vsub.s32 %v940, %v1088
            %v1090 = vrot.slane %v1012, %v1089
            %v1091 = vsel %vm945, %v1090, %v1086
            %1093 = vst [vmem:[#allocation15] sm:$0x1] %v1091
            %v1094 = vsub.f32 %v569, %v756
            %v1095 = vsub.f32 %v570, %v757
            %v1096 = vsub.f32 %v571, %v758
            %v1097 = vsub.f32 %v572, %v759
            %v1098 = vsub.f32 %v573, %v760
            %v1099 = vsub.f32 %v574, %v761
            %v1100 = vsub.f32 %v575, %v762
            %v1101 = vsub.f32 %v576, %v763
            %v1102 = vsub.f32 %v577, %v764
            %v1103 = vsub.f32 %v578, %v765
            %v1104 = vsub.f32 %v579, %v766
            %v1105 = vsub.f32 %v580, %v767
            %v1106 = vsub.f32 %v581, %v768
            %v1107 = vsub.f32 %v582, %v769
            %v1108 = vsub.f32 %v583, %v770
            %v1109 = vsub.f32 %v584, %v771
            %v1110 = vmax.f32 %v1094, 0.001
            %v1111 = vmax.f32 %v1095, 0.001
            %v1112 = vmax.f32 %v1096, 0.001
            %v1113 = vmax.f32 %v1097, 0.001
            %v1114 = vmax.f32 %v1098, 0.001
            %v1115 = vmax.f32 %v1099, 0.001
            %v1116 = vmax.f32 %v1100, 0.001
            %v1117 = vmax.f32 %v1101, 0.001
            %v1118 = vmax.f32 %v1102, 0.001
            %v1119 = vmax.f32 %v1103, 0.001
            %v1120 = vmax.f32 %v1104, 0.001
            %v1121 = vmax.f32 %v1105, 0.001
            %v1122 = vmax.f32 %v1106, 0.001
            %v1123 = vmax.f32 %v1107, 0.001
            %v1124 = vmax.f32 %v1108, 0.001
            %v1125 = vmax.f32 %v1109, 0.001
            %v1126 = vmin.f32 %v1110, 0.11111111
            %v1127 = vmin.f32 %v1111, 0.11111111
            %v1128 = vmin.f32 %v1112, 0.11111111
            %v1129 = vmin.f32 %v1113, 0.11111111
            %v1130 = vmin.f32 %v1114, 0.11111111
            %v1131 = vmin.f32 %v1115, 0.11111111
            %v1132 = vmin.f32 %v1116, 0.11111111
            %v1133 = vmin.f32 %v1117, 0.11111111
            %v1134 = vmin.f32 %v1118, 0.11111111
            %v1135 = vmin.f32 %v1119, 0.11111111
            %v1136 = vmin.f32 %v1120, 0.11111111
            %v1137 = vmin.f32 %v1121, 0.11111111
            %v1138 = vmin.f32 %v1122, 0.11111111
            %v1139 = vmin.f32 %v1123, 0.11111111
            %v1140 = vmin.f32 %v1124, 0.11111111
            %v1141 = vmin.f32 %v1125, 0.11111111
            %1158 = vset.pattern.permute.xlu0 0
            %1159 = vperm.xlu0 %1158, %v1126
            %v1160 = vpop.permute.xlu0 %1159
            %1161 = vset.pattern.permute.xlu0 0
            %1162 = vperm.xlu0 %1161, %v1127
            %v1163 = vpop.permute.xlu0 %1162
            %1164 = vset.pattern.permute.xlu0 0
            %1165 = vperm.xlu0 %1164, %v1128
            %v1166 = vpop.permute.xlu0 %1165
            %1167 = vset.pattern.permute.xlu0 0
            %1168 = vperm.xlu0 %1167, %v1129
            %v1169 = vpop.permute.xlu0 %1168
            %1170 = vset.pattern.permute.xlu0 0
            %1171 = vperm.xlu0 %1170, %v1130
            %v1172 = vpop.permute.xlu0 %1171
            %1173 = vset.pattern.permute.xlu0 0
            %1174 = vperm.xlu0 %1173, %v1131
            %v1175 = vpop.permute.xlu0 %1174
            %1176 = vset.pattern.permute.xlu0 0
            %1177 = vperm.xlu0 %1176, %v1132
            %v1178 = vpop.permute.xlu0 %1177
            %1179 = vset.pattern.permute.xlu0 0
            %1180 = vperm.xlu0 %1179, %v1133
            %v1181 = vpop.permute.xlu0 %1180
            %1182 = vset.pattern.permute.xlu0 0
            %1183 = vperm.xlu0 %1182, %v1134
            %v1184 = vpop.permute.xlu0 %1183
            %1185 = vset.pattern.permute.xlu0 0
            %1186 = vperm.xlu0 %1185, %v1135
            %v1187 = vpop.permute.xlu0 %1186
            %1188 = vset.pattern.permute.xlu0 0
            %1189 = vperm.xlu0 %1188, %v1136
            %v1190 = vpop.permute.xlu0 %1189
            %1191 = vset.pattern.permute.xlu0 0
            %1192 = vperm.xlu0 %1191, %v1137
            %v1193 = vpop.permute.xlu0 %1192
            %1194 = vset.pattern.permute.xlu0 0
            %1195 = vperm.xlu0 %1194, %v1138
            %v1196 = vpop.permute.xlu0 %1195
            %1197 = vset.pattern.permute.xlu0 0
            %1198 = vperm.xlu0 %1197, %v1139
            %v1199 = vpop.permute.xlu0 %1198
            %1200 = vset.pattern.permute.xlu0 0
            %1201 = vperm.xlu0 %1200, %v1140
            %v1202 = vpop.permute.xlu0 %1201
            %1203 = vset.pattern.permute.xlu0 0
            %1204 = vperm.xlu0 %1203, %v1141
            %v1205 = vpop.permute.xlu0 %1204
            %v1206 = vlaneseq
            %v1207 = vshrl.u32 %v1206, 7
            %v1208 = vsub.s32 %v837, %v1207
            %v1209 = vrot.slane %v1160, %v1208
            %v1210 = vlaneseq
            %v1211 = vshrl.u32 %v1210, 7
            %v1212 = vsub.s32 %v842, %v1211
            %v1213 = vrot.slane %v1163, %v1212
            %v1214 = vsel %vm847, %v1213, %v1209
            %v1215 = vlaneseq
            %v1216 = vshrl.u32 %v1215, 7
            %v1217 = vsub.s32 %v849, %v1216
            %v1218 = vrot.slane %v1166, %v1217
            %v1219 = vsel %vm854, %v1218, %v1214
            %v1220 = vlaneseq
            %v1221 = vshrl.u32 %v1220, 7
            %v1222 = vsub.s32 %v856, %v1221
            %v1223 = vrot.slane %v1169, %v1222
            %v1224 = vsel %vm861, %v1223, %v1219
            %v1225 = vlaneseq
            %v1226 = vshrl.u32 %v1225, 7
            %v1227 = vsub.s32 %v863, %v1226
            %v1228 = vrot.slane %v1172, %v1227
            %v1229 = vsel %vm868, %v1228, %v1224
            %v1230 = vlaneseq
            %v1231 = vshrl.u32 %v1230, 7
            %v1232 = vsub.s32 %v870, %v1231
            %v1233 = vrot.slane %v1175, %v1232
            %v1234 = vsel %vm875, %v1233, %v1229
            %v1235 = vlaneseq
            %v1236 = vshrl.u32 %v1235, 7
            %v1237 = vsub.s32 %v877, %v1236
            %v1238 = vrot.slane %v1178, %v1237
            %v1239 = vsel %vm882, %v1238, %v1234
            %v1240 = vlaneseq
            %v1241 = vshrl.u32 %v1240, 7
            %v1242 = vsub.s32 %v884, %v1241
            %v1243 = vrot.slane %v1181, %v1242
            %v1244 = vsel %vm889, %v1243, %v1239
            %v1245 = vlaneseq
            %v1246 = vshrl.u32 %v1245, 7
            %v1247 = vsub.s32 %v891, %v1246
            %v1248 = vrot.slane %v1184, %v1247
            %v1249 = vsel %vm896, %v1248, %v1244
            %v1250 = vlaneseq
            %v1251 = vshrl.u32 %v1250, 7
            %v1252 = vsub.s32 %v898, %v1251
            %v1253 = vrot.slane %v1187, %v1252
            %v1254 = vsel %vm903, %v1253, %v1249
            %v1255 = vlaneseq
            %v1256 = vshrl.u32 %v1255, 7
            %v1257 = vsub.s32 %v905, %v1256
            %v1258 = vrot.slane %v1190, %v1257
            %v1259 = vsel %vm910, %v1258, %v1254
            %v1260 = vlaneseq
            %v1261 = vshrl.u32 %v1260, 7
            %v1262 = vsub.s32 %v912, %v1261
            %v1263 = vrot.slane %v1193, %v1262
            %v1264 = vsel %vm917, %v1263, %v1259
            %v1265 = vlaneseq
            %v1266 = vshrl.u32 %v1265, 7
            %v1267 = vsub.s32 %v919, %v1266
            %v1268 = vrot.slane %v1196, %v1267
            %v1269 = vsel %vm924, %v1268, %v1264
            %v1270 = vlaneseq
            %v1271 = vshrl.u32 %v1270, 7
            %v1272 = vsub.s32 %v926, %v1271
            %v1273 = vrot.slane %v1199, %v1272
            %v1274 = vsel %vm931, %v1273, %v1269
            %v1275 = vlaneseq
            %v1276 = vshrl.u32 %v1275, 7
            %v1277 = vsub.s32 %v933, %v1276
            %v1278 = vrot.slane %v1202, %v1277
            %v1279 = vsel %vm938, %v1278, %v1274
            %v1280 = vlaneseq
            %v1281 = vshrl.u32 %v1280, 7
            %v1282 = vsub.s32 %v940, %v1281
            %v1283 = vrot.slane %v1205, %v1282
            %v1284 = vsel %vm945, %v1283, %v1279
            %1286 = vst [vmem:[#allocation5] sm:$0x1] %v1284
            %v1287 = vrcp.pop %v1126
            %v1288 = vrcp.pop %v1127
            %v1289 = vrcp.pop %v1128
            %v1290 = vrcp.pop %v1129
            %v1291 = vrcp.pop %v1130
            %v1292 = vrcp.pop %v1131
            %v1293 = vrcp.pop %v1132
            %v1294 = vrcp.pop %v1133
            %v1295 = vrcp.pop %v1134
            %v1296 = vrcp.pop %v1135
            %v1297 = vrcp.pop %v1136
            %v1298 = vrcp.pop %v1137
            %v1299 = vrcp.pop %v1138
            %v1300 = vrcp.pop %v1139
            %v1301 = vrcp.pop %v1140
            %v1302 = vrcp.pop %v1141
            %v1303 = vmul.f32 %v1126, %v1287
            %v1304 = vmul.f32 %v1127, %v1288
            %v1305 = vmul.f32 %v1128, %v1289
            %v1306 = vmul.f32 %v1129, %v1290
            %v1307 = vmul.f32 %v1130, %v1291
            %v1308 = vmul.f32 %v1131, %v1292
            %v1309 = vmul.f32 %v1132, %v1293
            %v1310 = vmul.f32 %v1133, %v1294
            %v1311 = vmul.f32 %v1134, %v1295
            %v1312 = vmul.f32 %v1135, %v1296
            %v1313 = vmul.f32 %v1136, %v1297
            %v1314 = vmul.f32 %v1137, %v1298
            %v1315 = vmul.f32 %v1138, %v1299
            %v1316 = vmul.f32 %v1139, %v1300
            %v1317 = vmul.f32 %v1140, %v1301
            %v1318 = vmul.f32 %v1141, %v1302
            %v1319 = vsub.f32 2.0, %v1303
            %v1320 = vsub.f32 2.0, %v1304
            %v1321 = vsub.f32 2.0, %v1305
            %v1322 = vsub.f32 2.0, %v1306
            %v1323 = vsub.f32 2.0, %v1307
            %v1324 = vsub.f32 2.0, %v1308
            %v1325 = vsub.f32 2.0, %v1309
            %v1326 = vsub.f32 2.0, %v1310
            %v1327 = vsub.f32 2.0, %v1311
            %v1328 = vsub.f32 2.0, %v1312
            %v1329 = vsub.f32 2.0, %v1313
            %v1330 = vsub.f32 2.0, %v1314
            %v1331 = vsub.f32 2.0, %v1315
            %v1332 = vsub.f32 2.0, %v1316
            %v1333 = vsub.f32 2.0, %v1317
            %v1334 = vsub.f32 2.0, %v1318
            %v1335 = vmul.f32 %v1287, %v1319
            %v1336 = vmul.f32 %v1288, %v1320
            %v1337 = vmul.f32 %v1289, %v1321
            %v1338 = vmul.f32 %v1290, %v1322
            %v1339 = vmul.f32 %v1291, %v1323
            %v1340 = vmul.f32 %v1292, %v1324
            %v1341 = vmul.f32 %v1293, %v1325
            %v1342 = vmul.f32 %v1294, %v1326
            %v1343 = vmul.f32 %v1295, %v1327
            %v1344 = vmul.f32 %v1296, %v1328
            %v1345 = vmul.f32 %v1297, %v1329
            %v1346 = vmul.f32 %v1298, %v1330
            %v1347 = vmul.f32 %v1299, %v1331
            %v1348 = vmul.f32 %v1300, %v1332
            %v1349 = vmul.f32 %v1301, %v1333
            %v1350 = vmul.f32 %v1302, %v1334
            %1367 = vset.pattern.permute.xlu0 0
            %1368 = vperm.xlu0 %1367, %v1335
            %v1369 = vpop.permute.xlu0 %1368
            %1370 = vset.pattern.permute.xlu0 0
            %1371 = vperm.xlu0 %1370, %v1336
            %v1372 = vpop.permute.xlu0 %1371
            %1373 = vset.pattern.permute.xlu0 0
            %1374 = vperm.xlu0 %1373, %v1337
            %v1375 = vpop.permute.xlu0 %1374
            %1376 = vset.pattern.permute.xlu0 0
            %1377 = vperm.xlu0 %1376, %v1338
            %v1378 = vpop.permute.xlu0 %1377
            %1379 = vset.pattern.permute.xlu0 0
            %1380 = vperm.xlu0 %1379, %v1339
            %v1381 = vpop.permute.xlu0 %1380
            %1382 = vset.pattern.permute.xlu0 0
            %1383 = vperm.xlu0 %1382, %v1340
            %v1384 = vpop.permute.xlu0 %1383
            %1385 = vset.pattern.permute.xlu0 0
            %1386 = vperm.xlu0 %1385, %v1341
            %v1387 = vpop.permute.xlu0 %1386
            %1388 = vset.pattern.permute.xlu0 0
            %1389 = vperm.xlu0 %1388, %v1342
            %v1390 = vpop.permute.xlu0 %1389
            %1391 = vset.pattern.permute.xlu0 0
            %1392 = vperm.xlu0 %1391, %v1343
            %v1393 = vpop.permute.xlu0 %1392
            %1394 = vset.pattern.permute.xlu0 0
            %1395 = vperm.xlu0 %1394, %v1344
            %v1396 = vpop.permute.xlu0 %1395
            %1397 = vset.pattern.permute.xlu0 0
            %1398 = vperm.xlu0 %1397, %v1345
            %v1399 = vpop.permute.xlu0 %1398
            %1400 = vset.pattern.permute.xlu0 0
            %1401 = vperm.xlu0 %1400, %v1346
            %v1402 = vpop.permute.xlu0 %1401
            %1403 = vset.pattern.permute.xlu0 0
            %1404 = vperm.xlu0 %1403, %v1347
            %v1405 = vpop.permute.xlu0 %1404
            %1406 = vset.pattern.permute.xlu0 0
            %1407 = vperm.xlu0 %1406, %v1348
            %v1408 = vpop.permute.xlu0 %1407
            %1409 = vset.pattern.permute.xlu0 0
            %1410 = vperm.xlu0 %1409, %v1349
            %v1411 = vpop.permute.xlu0 %1410
            %1412 = vset.pattern.permute.xlu0 0
            %1413 = vperm.xlu0 %1412, %v1350
            %v1414 = vpop.permute.xlu0 %1413
            %v1415 = vlaneseq
            %v1416 = vshrl.u32 %v1415, 7
            %v1417 = vsub.s32 %v837, %v1416
            %v1418 = vrot.slane %v1369, %v1417
            %v1419 = vlaneseq
            %v1420 = vshrl.u32 %v1419, 7
            %v1421 = vsub.s32 %v842, %v1420
            %v1422 = vrot.slane %v1372, %v1421
            %v1423 = vsel %vm847, %v1422, %v1418
            %v1424 = vlaneseq
            %v1425 = vshrl.u32 %v1424, 7
            %v1426 = vsub.s32 %v849, %v1425
            %v1427 = vrot.slane %v1375, %v1426
            %v1428 = vsel %vm854, %v1427, %v1423
            %v1429 = vlaneseq
            %v1430 = vshrl.u32 %v1429, 7
            %v1431 = vsub.s32 %v856, %v1430
            %v1432 = vrot.slane %v1378, %v1431
            %v1433 = vsel %vm861, %v1432, %v1428
            %v1434 = vlaneseq
            %v1435 = vshrl.u32 %v1434, 7
            %v1436 = vsub.s32 %v863, %v1435
            %v1437 = vrot.slane %v1381, %v1436
            %v1438 = vsel %vm868, %v1437, %v1433
            %v1439 = vlaneseq
            %v1440 = vshrl.u32 %v1439, 7
            %v1441 = vsub.s32 %v870, %v1440
            %v1442 = vrot.slane %v1384, %v1441
            %v1443 = vsel %vm875, %v1442, %v1438
            %v1444 = vlaneseq
            %v1445 = vshrl.u32 %v1444, 7
            %v1446 = vsub.s32 %v877, %v1445
            %v1447 = vrot.slane %v1387, %v1446
            %v1448 = vsel %vm882, %v1447, %v1443
            %v1449 = vlaneseq
            %v1450 = vshrl.u32 %v1449, 7
            %v1451 = vsub.s32 %v884, %v1450
            %v1452 = vrot.slane %v1390, %v1451
            %v1453 = vsel %vm889, %v1452, %v1448
            %v1454 = vlaneseq
            %v1455 = vshrl.u32 %v1454, 7
            %v1456 = vsub.s32 %v891, %v1455
            %v1457 = vrot.slane %v1393, %v1456
            %v1458 = vsel %vm896, %v1457, %v1453
            %v1459 = vlaneseq
            %v1460 = vshrl.u32 %v1459, 7
            %v1461 = vsub.s32 %v898, %v1460
            %v1462 = vrot.slane %v1396, %v1461
            %v1463 = vsel %vm903, %v1462, %v1458
            %v1464 = vlaneseq
            %v1465 = vshrl.u32 %v1464, 7
            %v1466 = vsub.s32 %v905, %v1465
            %v1467 = vrot.slane %v1399, %v1466
            %v1468 = vsel %vm910, %v1467, %v1463
            %v1469 = vlaneseq
            %v1470 = vshrl.u32 %v1469, 7
            %v1471 = vsub.s32 %v912, %v1470
            %v1472 = vrot.slane %v1402, %v1471
            %v1473 = vsel %vm917, %v1472, %v1468
            %v1474 = vlaneseq
            %v1475 = vshrl.u32 %v1474, 7
            %v1476 = vsub.s32 %v919, %v1475
            %v1477 = vrot.slane %v1405, %v1476
            %v1478 = vsel %vm924, %v1477, %v1473
            %v1479 = vlaneseq
            %v1480 = vshrl.u32 %v1479, 7
            %v1481 = vsub.s32 %v926, %v1480
            %v1482 = vrot.slane %v1408, %v1481
            %v1483 = vsel %vm931, %v1482, %v1478
            %v1484 = vlaneseq
            %v1485 = vshrl.u32 %v1484, 7
            %v1486 = vsub.s32 %v933, %v1485
            %v1487 = vrot.slane %v1411, %v1486
            %v1488 = vsel %vm938, %v1487, %v1483
            %v1489 = vlaneseq
            %v1490 = vshrl.u32 %v1489, 7
            %v1491 = vsub.s32 %v940, %v1490
            %v1492 = vrot.slane %v1414, %v1491
            %v1493 = vsel %vm945, %v1492, %v1488
            %1495 = vst [vmem:[#allocation6] sm:$0x1] %v1493
          $region56: #{tpu_custom_call.1} parent=47 // pred_fallthru
            _
        $region48: #{tpu_custom_call.1} parent=35 // pred_fallthru
          _
        %p1496 = scmp.eq.s32.totalorder %s30, 1
        // Predicated region
        $region57: #{tpu_custom_call.1} parent=35 // pred_check
          %p1497 = pneg %p1496
        $region58: #{tpu_custom_call.1} parent=35 // pred_check_branch
          %1499 = sbr.rel (%p1497) target = $region60
        $region59: #{tpu_custom_call.1} parent=35 // pred_region
          %p1500 = scmp.eq.s32.totalorder %s31, 0
          // Predicated region
          $region61: #{tpu_custom_call.1} parent=59 // pred_check
            %p1501 = pneg %p1500
          $region62: #{tpu_custom_call.1} parent=59 // pred_check_branch
            %1503 = sbr.rel (%p1501) target = $region64
          $region63: #{tpu_custom_call.1} parent=59 // pred_region
            %1504 = vst [vmem:[#allocation4] sm:$0x1] 0.0
          $region64: #{tpu_custom_call.1} parent=59 // pred_fallthru
            _
          %v1505 = vld [vmem:[#allocation5] sm:$0x1]
          %v1506 = vld [vmem:[#allocation6] sm:$0x1]
          %v1508 = vlaneseq
          %v1509 = vshrl.u32 %v1508, 7
          %v1510 = vsub.s32 0, %v1509
          %v1511 = vrot.slane %v1505, %v1510
          %vm1513 = vcmp.lt.f32.partialorder %v314, %v1511
          %vm1514 = vcmp.lt.f32.partialorder %v315, %v1511
          %v1515 = vmul.f32 %v314, 0.5
          %v1516 = vmul.f32 %v315, 0.5
          %v1517 = vmul.f32 %v1515, %v314
          %v1518 = vmul.f32 %v1516, %v315
          %v1520 = vlaneseq
          %v1521 = vshrl.u32 %v1520, 7
          %v1522 = vsub.s32 0, %v1521
          %v1523 = vrot.slane %v1506, %v1522
          %v1525 = vmul.f32 %v1517, %v1523
          %v1526 = vmul.f32 %v1518, %v1523
          %v1527 = vmul.f32 %v1505, 0.5
          %v1529 = vlaneseq
          %v1530 = vshrl.u32 %v1529, 7
          %v1531 = vsub.s32 0, %v1530
          %v1532 = vrot.slane %v1527, %v1531
          %v1534 = vsub.f32 %v314, %v1532
          %v1535 = vsub.f32 %v315, %v1532
          %v1536 = vsel %vm1513, %v1525, %v1534
          %v1537 = vsel %vm1514, %v1526, %v1535
          %v1538 = vld [vmem:[#allocation4] sm:$0x1]
          %v1539 = vadd.f32 %v1536, %v1537
          %v1540 = vrot.slane %v1539, 4
          %v1541 = vadd.f32 %v1539, %v1540
          %v1542 = vrot.slane %v1541, 2
          %v1543 = vadd.f32 %v1541, %v1542
          %v1544 = vrot.slane %v1543, 1
          %v1545 = vadd.f32 %v1543, %v1544
          %v1546 = vadd.f32 %v1538, %v1545
          %1547 = vst [vmem:[#allocation4] sm:$0x1] %v1546
          %p1548 = scmp.eq.s32.totalorder %s31, 3
          // Predicated region
          $region65: #{tpu_custom_call.1} parent=59 // pred_check
            %p1549 = pneg %p1548
          $region66: #{tpu_custom_call.1} parent=59 // pred_check_branch
            %1551 = sbr.rel (%p1549) target = $region68
          $region67: #{tpu_custom_call.1} parent=59 // pred_region
            %v1552 = vld [vmem:[#allocation4] sm:$0x1]
            %vm1553 = vcmask 1040384
            %v1554 = vsel %vm1553, %v1552, 0.0
            %1555 = vadd.xlane.f32.xlu0 %v1554
            %v1556 = vpop.xlane.xlu0 %1555
            %vm1557 = vcmask 0
            %1558 = vst.msk [vmem:[#allocation12] sm:$0x1] %vm1557, %v1556
          $region68: #{tpu_custom_call.1} parent=59 // pred_fallthru
            _
        $region60: #{tpu_custom_call.1} parent=35 // pred_fallthru
          _
        // Predicated region
        $region69: #{tpu_custom_call.1} parent=35 // pred_check
          %p1559 = pneg %p145
        $region70: #{tpu_custom_call.1} parent=35 // pred_check_branch
          %1561 = sbr.rel (%p1559) target = $region72
        $region71: #{tpu_custom_call.1} parent=35 // pred_region
          %s1563 = ssub.s32 16, 16
          %1564 = vsyncadd [#allocation9], %s1563
          %s1566 = sshll.u32 [#allocation12], 4
          %s1567 = int_to_ptr.vmem [resolvable:$true] %s1566
          %1569 = dma.vmem_to_hbm [thread:$0]  %s1567, 16, %s4, [#allocation9]
        $region72: #{tpu_custom_call.1} parent=35 // pred_fallthru
          _
        // Predicated region
        $region73: #{tpu_custom_call.1} parent=35 // pred_check
          %p1570 = pneg %p166
        $region74: #{tpu_custom_call.1} parent=35 // pred_check_branch
          %1572 = sbr.rel (%p1570) target = $region76
        $region75: #{tpu_custom_call.1} parent=35 // pred_region
          %s1574 = ssub.s32 16, 16
          %1575 = vsyncadd [#allocation14], %s1574
          %s1577 = sshll.u32 [#allocation13], 4
          %s1578 = int_to_ptr.vmem [resolvable:$true] %s1577
          %1580 = dma.vmem_to_hbm [thread:$0]  %s1578, 16, %s5, [#allocation14]
        $region76: #{tpu_custom_call.1} parent=35 // pred_fallthru
          _
        // Predicated region
        $region77: #{tpu_custom_call.1} parent=35 // pred_check
          %p1581 = pneg %p187
        $region78: #{tpu_custom_call.1} parent=35 // pred_check_branch
          %1583 = sbr.rel (%p1581) target = $region80
        $region79: #{tpu_custom_call.1} parent=35 // pred_region
          %s1585 = ssub.s32 16, 16
          %1586 = vsyncadd [#allocation14], %s1585
          %s1588 = sshll.u32 [#allocation15], 4
          %s1589 = int_to_ptr.vmem [resolvable:$true] %s1588
          %1591 = dma.vmem_to_hbm [thread:$0]  %s1589, 16, %s6, [#allocation14]
        $region80: #{tpu_custom_call.1} parent=35 // pred_fallthru
          _
        // Predicated region
        $region81: #{tpu_custom_call.1} parent=35 // pred_check
          %p1592 = pneg %p145
        $region82: #{tpu_custom_call.1} parent=35 // pred_check_branch
          %1594 = sbr.rel (%p1592) target = $region84
        $region83: #{tpu_custom_call.1} parent=35 // pred_region
          %1595 = dma.done [#allocation9], 16
        $region84: #{tpu_custom_call.1} parent=35 // pred_fallthru
          _
        // Predicated region
        $region85: #{tpu_custom_call.1} parent=35 // pred_check
          %p1596 = pneg %p166
        $region86: #{tpu_custom_call.1} parent=35 // pred_check_branch
          %1598 = sbr.rel (%p1596) target = $region88
        $region87: #{tpu_custom_call.1} parent=35 // pred_region
          %1599 = dma.done [#allocation14], 16
        $region88: #{tpu_custom_call.1} parent=35 // pred_fallthru
          _
        // Predicated region
        $region89: #{tpu_custom_call.1} parent=35 // pred_check
          %p1600 = pneg %p187
        $region90: #{tpu_custom_call.1} parent=35 // pred_check_branch
          %1602 = sbr.rel (%p1600) target = $region92
        $region91: #{tpu_custom_call.1} parent=35 // pred_region
          %1603 = dma.done [#allocation14], 16
        $region92: #{tpu_custom_call.1} parent=35 // pred_fallthru
          _
      $region36: #{tpu_custom_call.1} parent=5 // pred_fallthru
        _
      %p1604 = scmp.le.s32.totalorder 2, %s21
      // Predicated region
      $region93: #{tpu_custom_call.1} parent=5 // pred_check
        %p1605 = pneg %p1604
      $region94: #{tpu_custom_call.1} parent=5 // pred_check_branch
        %1607 = sbr.rel (%p1605) target = $region96
      $region95: #{tpu_custom_call.1} parent=5 // pred_region
        %s1608 = ssub.s32 %s21, 2
      $region96: #{tpu_custom_call.1} parent=5 // pred_fallthru
        _
    $region6: #{tpu_custom_call.1} parent=1 // loop_footer
      %s25 = sadd.s32 1, %s21
    $region7: #{tpu_custom_call.1} parent=1 // loop_footer_branch
      %20 = sbr.rel target = $region3
    $region8: #{tpu_custom_call.1} parent=1 // loop_exit
      _
    %1609 = vsyncpa [#allocation8], 1
    %s1610 = scalar_lea.sflag [#allocation8], 1
    %1611 = vsyncpa %s1610, 1
    %1612 = vsyncpa [#allocation11], 1
    %s1613 = scalar_lea.sflag [#allocation11], 1
    %1614 = vsyncpa %s1613, 1
    %1615 = vsyncpa [#allocation9], 1
    %s1616 = scalar_lea.sflag [#allocation9], 1
    %1617 = vsyncpa %s1616, 1
    %1618 = vsyncpa [#allocation14], 1

</llo_original>
